<compile_context>
chip_gen: v7x
topology: tpu7x:2x2x1
jax: 0.10.0
libtpu: 0.0.40
codegen_flags: <defaults>
</compile_context>

<pallas_src>
import jax
import jax.numpy as jnp
from jax.experimental import pallas as pl
from jax.experimental.pallas import tpu as pltpu


def graph_stats_encoder_kernel(x_ref, s_ref, scale_ref, shift_ref,
                               wx_ref, bx_ref, w1_ref, b1_ref, w2_ref, b2_ref,
                               out_ref):
    # x_ref     : [tile_g, 4*dim_in]     4 logical node rows per physical row
    # s_ref     : [tile_g, 4*stats_dim]
    # scale/shift: [1, 4*stats_dim]      BN affine (batch stats folded in wrapper)
    # wx_ref    : [4*dim_in,   128] block-diag: logical x -> h lanes of its slot
    # w1_ref    : [4*stats_dim, 64] block-diag: BN(stats) -> hidden lanes
    # w2_ref    : [4*hid,      128] block-diag: hidden -> pe lanes of its slot
    # bx/b2_ref : [1, 128] (zero outside their lane groups), b1_ref: [1, 64]
    # out_ref   : [tile_g, 128]  = 4 logical rows x [h(24) | pe(8)]
    s_norm = s_ref[...] * scale_ref[...] + shift_ref[...]          # BatchNorm1d

    h = jnp.dot(x_ref[...], wx_ref[...],
                preferred_element_type=jnp.float32) + bx_ref[...]  # zeros on pe lanes

    hid = jnp.maximum(
        jnp.dot(s_norm, w1_ref[...],
                preferred_element_type=jnp.float32) + b1_ref[...], 0.0)

    pe = jnp.maximum(
        jnp.dot(hid, w2_ref[...],
                preferred_element_type=jnp.float32) + b2_ref[...], 0.0)  # zeros on h lanes

    out_ref[...] = (h + pe).astype(out_ref.dtype)


def graph_stats_encoder(stats, x, params, *, tile_rows=16384):
    """stats: [N, stats_dim] concatenated raw graph stats; x: [N, dim_in].

    Returns the new node features [N, dim_emb] (float32).
    """
    N, stats_dim = stats.shape
    dim_in = x.shape[1]
    h_dim = params["wx"].shape[1]
    hid = params["w1"].shape[1]
    dim_pe = params["w2"].shape[1]
    dim_emb = h_dim + dim_pe
    G = 4                              # logical rows per lane-dense physical row
    assert G * dim_emb == 128, "group factor chosen so the output is 128 lanes"

    stats = stats.astype(jnp.float32)
    x = x.astype(jnp.float32)

    # ---- BatchNorm1d training-mode batch stats over the TRUE N rows (two-pass),
    # hoisted out of the tile loop.
    mean = jnp.mean(stats, axis=0, keepdims=True)
    var = jnp.mean((stats - mean) ** 2, axis=0, keepdims=True)
    inv_std = jax.lax.rsqrt(var + 1e-5)
    scale = params["gamma"] * inv_std                            # [1, stats_dim]
    shift = params["beta"] - params["gamma"] * mean * inv_std    # [1, stats_dim]
    scale_g = jnp.tile(scale, (1, G))                            # [1, G*stats_dim]
    shift_g = jnp.tile(shift, (1, G))

    # ---- 4x-replicated block-diagonal weights so every logical row's linear
    # layers land in its own disjoint 32-lane slot of the 128-lane output.
    # (Tiny arrays; built once per call in plain JAX.)
    wxg = jnp.zeros((G * dim_in, G * dim_emb), jnp.float32)
    bxg = jnp.zeros((1, G * dim_emb), jnp.float32)
    w1g = jnp.zeros((G * stats_dim, G * hid), jnp.float32)
    b1g = jnp.zeros((1, G * hid), jnp.float32)
    w2g = jnp.zeros((G * hid, G * dim_emb), jnp.float32)
    b2g = jnp.zeros((1, G * dim_emb), jnp.float32)
    for g in range(G):
        wxg = wxg.at[g * dim_in:(g + 1) * dim_in,
                     g * dim_emb:g * dim_emb + h_dim].set(params["wx"])
        bxg = bxg.at[:, g * dim_emb:g * dim_emb + h_dim].set(params["bx"])
        w1g = w1g.at[g * stats_dim:(g + 1) * stats_dim,
                     g * hid:(g + 1) * hid].set(params["w1"])
        b1g = b1g.at[:, g * hid:(g + 1) * hid].set(params["b1"])
        w2g = w2g.at[g * hid:(g + 1) * hid,
                     g * dim_emb + h_dim:(g + 1) * dim_emb].set(params["w2"])
        b2g = b2g.at[:, g * dim_emb + h_dim:(g + 1) * dim_emb].set(params["b2"])

    # ---- Group 4 logical rows per physical row (free reshape of contiguous HBM
    # arrays).  Only pad N to a multiple of 4 if required; the last grid block
    # may be ragged (Pallas clips the partial block, padded rows are discarded).
    n4 = pl.cdiv(N, G) * G
    if n4 != N:
        stats = jnp.pad(stats, ((0, n4 - N), (0, 0)))
        x = jnp.pad(x, ((0, n4 - N), (0, 0)))
    n_g = n4 // G
    x_g = x.reshape(n_g, G * dim_in)
    s_g = stats.reshape(n_g, G * stats_dim)

    tile_g = min(max(tile_rows // G, 8), n_g)
    tile_g = ((tile_g + 7) // 8) * 8            # sublane (8) alignment
    grid = (pl.cdiv(n_g, tile_g),)

    full = lambda arr: pl.BlockSpec(arr.shape, lambda i: (0, 0))

    out_g = pl.pallas_call(
        graph_stats_encoder_kernel,
        out_shape=jax.ShapeDtypeStruct((n_g, G * dim_emb), jnp.float32),
        grid=grid,
        in_specs=[
            pl.BlockSpec((tile_g, G * dim_in), lambda i: (i, 0)),
            pl.BlockSpec((tile_g, G * stats_dim), lambda i: (i, 0)),
            full(scale_g), full(shift_g),
            full(wxg), full(bxg),
            full(w1g), full(b1g),
            full(w2g), full(b2g),
        ],
        out_specs=pl.BlockSpec((tile_g, G * dim_emb), lambda i: (i, 0)),
        compiler_params=pltpu.CompilerParams(
            dimension_semantics=("parallel",),
            vmem_limit_bytes=32 * 1024 * 1024),
    )(x_g, s_g, scale_g, shift_g, wxg, bxg, w1g, b1g, w2g, b2g)

    # Ungroup (free reshape: rows are contiguous in HBM) and drop pad rows.
    return out_g.reshape(n4, dim_emb)[:N]


if __name__ == "__main__":
    # ---- config (mirrors the module's __init__ hyper-parameters) ----
    N = 6002          # nodes (not a multiple of 4 -> exercises tail handling)
    dim_in = 4        # cfg.share.dim_in
    n_stats = 3       # len(cfg.dataset.graph_stats), each stat is [N, 1]
    stats_dim = n_stats
    dim_pe = 8        # cfg.posenc_GraphStats.dim_pe
    dim_emb = 32
    h_dim = dim_emb - dim_pe
    hid = 2 * dim_pe

    key = jax.random.PRNGKey(0)
    keys = jax.random.split(key, 12)

    # batch.x and the per-node graph stats (forward concatenates them along dim 1)
    x = jax.random.normal(keys[0], (N, dim_in), dtype=jnp.float32)
    stat_list = [
        jax.random.normal(keys[1 + i], (N, 1), dtype=jnp.float32)
        for i in range(n_stats)
    ]
    stats = jnp.concatenate(stat_list, axis=1)   # torch.cat(stats, dim=1).float()

    # deterministic parameters (weights stored as [in, out])
    params = {
        "gamma": 1.0 + 0.01 * jax.random.normal(keys[4], (1, stats_dim), jnp.float32),
        "beta": 0.01 * jax.random.normal(keys[5], (1, stats_dim), jnp.float32),
        "w1": 0.1 * jax.random.normal(keys[6], (stats_dim, hid), jnp.float32),
        "b1": 0.1 * jax.random.normal(keys[7], (1, hid), jnp.float32),
        "w2": 0.1 * jax.random.normal(keys[8], (hid, dim_pe), jnp.float32),
        "b2": 0.1 * jax.random.normal(keys[9], (1, dim_pe), jnp.float32),
        "wx": 0.1 * jax.random.normal(keys[10], (dim_in, h_dim), jnp.float32),
        "bx": 0.1 * jax.random.normal(keys[11], (1, h_dim), jnp.float32),
    }

    # Small tile for the demo so the grid actually loops (n_g=1501 -> 3 steps,
    # ragged last block).  Production default is tile_rows=16384.
    out = graph_stats_encoder(stats, x, params, tile_rows=2048)
    out = jax.block_until_ready(out)

    # ---- pure-JAX reference (un-grouped semantic path) ----
    mean = jnp.mean(stats, axis=0, keepdims=True)
    var = jnp.mean((stats - mean) ** 2, axis=0, keepdims=True)
    pe = (stats - mean) * jax.lax.rsqrt(var + 1e-5) * params["gamma"] + params["beta"]
    pe = jnp.maximum(pe @ params["w1"] + params["b1"], 0.0)
    pe = jnp.maximum(pe @ params["w2"] + params["b2"], 0.0)
    h = x @ params["wx"] + params["bx"]
    ref = jnp.concatenate([h, pe], axis=1)

    assert out.shape == (N, dim_emb)
    # Tolerance covers MXU default-precision rounding differences between the
    # grouped block-diagonal matmuls and the reference-shaped matmuls.
    assert jnp.allclose(out, ref, atol=1e-3, rtol=1e-3)

    print("KERNEL_OK")
</pallas_src>

<mosaic_0001>
module attributes {stable_mosaic.version = 11 : i64} {
  func.func @graph_stats_encoder_kernel(%arg0: i32, %arg1: memref<512x16xf32, #tpu.memory_space<vmem>>, %arg2: memref<512x12xf32, #tpu.memory_space<vmem>>, %arg3: memref<1x12xf32, #tpu.memory_space<vmem>>, %arg4: memref<1x12xf32, #tpu.memory_space<vmem>>, %arg5: memref<16x128xf32, #tpu.memory_space<vmem>>, %arg6: memref<1x128xf32, #tpu.memory_space<vmem>>, %arg7: memref<12x64xf32, #tpu.memory_space<vmem>>, %arg8: memref<1x64xf32, #tpu.memory_space<vmem>>, %arg9: memref<64x128xf32, #tpu.memory_space<vmem>>, %arg10: memref<1x128xf32, #tpu.memory_space<vmem>>, %arg11: memref<512x128xf32, #tpu.memory_space<vmem>>) attributes {dimension_semantics = [#tpu.dimension_semantics<parallel>], iteration_bounds = array<i64: 3>, scalar_prefetch = 0 : i64, scratch_operands = 0 : i64, tpu.core_type = #tpu.core_type<tc>, window_params = [{transform_indices = @transform_0, window_bounds = array<i64: 512, 16>}, {transform_indices = @transform_1, window_bounds = array<i64: 512, 12>}, {pipeline_mode = #tpu.pipeline_mode<synchronous>, transform_indices = @transform_2, window_bounds = array<i64: 1, 12>}, {pipeline_mode = #tpu.pipeline_mode<synchronous>, transform_indices = @transform_3, window_bounds = array<i64: 1, 12>}, {pipeline_mode = #tpu.pipeline_mode<synchronous>, transform_indices = @transform_4, window_bounds = array<i64: 16, 128>}, {pipeline_mode = #tpu.pipeline_mode<synchronous>, transform_indices = @transform_5, window_bounds = array<i64: 1, 128>}, {pipeline_mode = #tpu.pipeline_mode<synchronous>, transform_indices = @transform_6, window_bounds = array<i64: 12, 64>}, {pipeline_mode = #tpu.pipeline_mode<synchronous>, transform_indices = @transform_7, window_bounds = array<i64: 1, 64>}, {pipeline_mode = #tpu.pipeline_mode<synchronous>, transform_indices = @transform_8, window_bounds = array<i64: 64, 128>}, {pipeline_mode = #tpu.pipeline_mode<synchronous>, transform_indices = @transform_9, window_bounds = array<i64: 1, 128>}, {transform_indices = @transform_10, window_bounds = array<i64: 512, 128>}]} {
    %c0 = arith.constant 0 : index
    %c0_0 = arith.constant 0 : index
    %0 = vector.load %arg2[%c0, %c0_0] : memref<512x12xf32, #tpu.memory_space<vmem>>, vector<512x12xf32>
    %c0_1 = arith.constant 0 : index
    %c0_2 = arith.constant 0 : index
    %1 = vector.load %arg3[%c0_1, %c0_2] : memref<1x12xf32, #tpu.memory_space<vmem>>, vector<1x12xf32>
    %2 = vector.broadcast %1 : vector<1x12xf32> to vector<512x12xf32>
    %3 = arith.mulf %0, %2 : vector<512x12xf32>
    %c0_3 = arith.constant 0 : index
    %c0_4 = arith.constant 0 : index
    %4 = vector.load %arg4[%c0_3, %c0_4] : memref<1x12xf32, #tpu.memory_space<vmem>>, vector<1x12xf32>
    %5 = vector.broadcast %4 : vector<1x12xf32> to vector<512x12xf32>
    %6 = arith.addf %3, %5 : vector<512x12xf32>
    %c0_5 = arith.constant 0 : index
    %c0_6 = arith.constant 0 : index
    %7 = vector.load %arg1[%c0_5, %c0_6] : memref<512x16xf32, #tpu.memory_space<vmem>>, vector<512x16xf32>
    %c0_7 = arith.constant 0 : index
    %c0_8 = arith.constant 0 : index
    %8 = vector.load %arg5[%c0_7, %c0_8] : memref<16x128xf32, #tpu.memory_space<vmem>>, vector<16x128xf32>
    %cst = arith.constant dense<0.000000e+00> : vector<512x128xf32>
    %9 = tpu.matmul %7, %8, %cst {dimension_numbers = #tpu.dot_dimension_numbers<[1], [0], [0], [1], [0, 0, 1, 1], [], []>} : vector<512x16xf32>, vector<16x128xf32>, vector<512x128xf32> -> vector<512x128xf32>
    %c0_9 = arith.constant 0 : index
    %c0_10 = arith.constant 0 : index
    %10 = vector.load %arg6[%c0_9, %c0_10] : memref<1x128xf32, #tpu.memory_space<vmem>>, vector<1x128xf32>
    %11 = vector.broadcast %10 : vector<1x128xf32> to vector<512x128xf32>
    %12 = arith.addf %9, %11 : vector<512x128xf32>
    %c0_11 = arith.constant 0 : index
    %c0_12 = arith.constant 0 : index
    %13 = vector.load %arg7[%c0_11, %c0_12] : memref<12x64xf32, #tpu.memory_space<vmem>>, vector<12x64xf32>
    %cst_13 = arith.constant dense<0.000000e+00> : vector<512x64xf32>
    %14 = tpu.matmul %6, %13, %cst_13 {dimension_numbers = #tpu.dot_dimension_numbers<[1], [0], [0], [1], [0, 0, 1, 1], [], []>} : vector<512x12xf32>, vector<12x64xf32>, vector<512x64xf32> -> vector<512x64xf32>
    %c0_14 = arith.constant 0 : index
    %c0_15 = arith.constant 0 : index
    %15 = vector.load %arg8[%c0_14, %c0_15] : memref<1x64xf32, #tpu.memory_space<vmem>>, vector<1x64xf32>
    %16 = vector.broadcast %15 : vector<1x64xf32> to vector<512x64xf32>
    %17 = arith.addf %14, %16 : vector<512x64xf32>
    %cst_16 = arith.constant 0.000000e+00 : f32
    %18 = vector.broadcast %cst_16 : f32 to vector<512x64xf32>
    %19 = arith.maximumf %17, %18 : vector<512x64xf32>
    %c0_17 = arith.constant 0 : index
    %c0_18 = arith.constant 0 : index
    %20 = vector.load %arg9[%c0_17, %c0_18] : memref<64x128xf32, #tpu.memory_space<vmem>>, vector<64x128xf32>
    %cst_19 = arith.constant dense<0.000000e+00> : vector<512x128xf32>
    %21 = tpu.matmul %19, %20, %cst_19 {dimension_numbers = #tpu.dot_dimension_numbers<[1], [0], [0], [1], [0, 0, 1, 1], [], []>} : vector<512x64xf32>, vector<64x128xf32>, vector<512x128xf32> -> vector<512x128xf32>
    %c0_20 = arith.constant 0 : index
    %c0_21 = arith.constant 0 : index
    %22 = vector.load %arg10[%c0_20, %c0_21] : memref<1x128xf32, #tpu.memory_space<vmem>>, vector<1x128xf32>
    %23 = vector.broadcast %22 : vector<1x128xf32> to vector<512x128xf32>
    %24 = arith.addf %21, %23 : vector<512x128xf32>
    %cst_22 = arith.constant 0.000000e+00 : f32
    %25 = vector.broadcast %cst_22 : f32 to vector<512x128xf32>
    %26 = arith.maximumf %24, %25 : vector<512x128xf32>
    %27 = arith.addf %12, %26 : vector<512x128xf32>
    %c0_23 = arith.constant 0 : index
    %c0_24 = arith.constant 0 : index
    %28 = vector.load %arg11[%c0_23, %c0_24] : memref<512x128xf32, #tpu.memory_space<vmem>>, vector<512x128xf32>
    tpu.vector_store %arg11[%c0_23, %c0_24], %27 {strides = array<i32>} : memref<512x128xf32, #tpu.memory_space<vmem>>, vector<512x128xf32>,
    return
  }
  func.func @transform_0(%arg0: i32) -> (i32, i32) {
    %c0_i32 = arith.constant 0 : i32
    %c0_i32_0 = arith.constant 0 : i32
    return %arg0, %c0_i32 : i32, i32
  }
  func.func @transform_1(%arg0: i32) -> (i32, i32) {
    %c0_i32 = arith.constant 0 : i32
    %c0_i32_0 = arith.constant 0 : i32
    return %arg0, %c0_i32 : i32, i32
  }
  func.func @transform_2(%arg0: i32) -> (i32, i32) {
    %c0_i32 = arith.constant 0 : i32
    %c0_i32_0 = arith.constant 0 : i32
    %c0_i32_1 = arith.constant 0 : i32
    return %c0_i32, %c0_i32_0 : i32, i32
  }
  func.func @transform_3(%arg0: i32) -> (i32, i32) {
    %c0_i32 = arith.constant 0 : i32
    %c0_i32_0 = arith.constant 0 : i32
    %c0_i32_1 = arith.constant 0 : i32
    return %c0_i32, %c0_i32_0 : i32, i32
  }
  func.func @transform_4(%arg0: i32) -> (i32, i32) {
    %c0_i32 = arith.constant 0 : i32
    %c0_i32_0 = arith.constant 0 : i32
    %c0_i32_1 = arith.constant 0 : i32
    return %c0_i32, %c0_i32_0 : i32, i32
  }
  func.func @transform_5(%arg0: i32) -> (i32, i32) {
    %c0_i32 = arith.constant 0 : i32
    %c0_i32_0 = arith.constant 0 : i32
    %c0_i32_1 = arith.constant 0 : i32
    return %c0_i32, %c0_i32_0 : i32, i32
  }
  func.func @transform_6(%arg0: i32) -> (i32, i32) {
    %c0_i32 = arith.constant 0 : i32
    %c0_i32_0 = arith.constant 0 : i32
    %c0_i32_1 = arith.constant 0 : i32
    return %c0_i32, %c0_i32_0 : i32, i32
  }
  func.func @transform_7(%arg0: i32) -> (i32, i32) {
    %c0_i32 = arith.constant 0 : i32
    %c0_i32_0 = arith.constant 0 : i32
    %c0_i32_1 = arith.constant 0 : i32
    return %c0_i32, %c0_i32_0 : i32, i32
  }
  func.func @transform_8(%arg0: i32) -> (i32, i32) {
    %c0_i32 = arith.constant 0 : i32
    %c0_i32_0 = arith.constant 0 : i32
    %c0_i32_1 = arith.constant 0 : i32
    return %c0_i32, %c0_i32_0 : i32, i32
  }
  func.func @transform_9(%arg0: i32) -> (i32, i32) {
    %c0_i32 = arith.constant 0 : i32
    %c0_i32_0 = arith.constant 0 : i32
    %c0_i32_1 = arith.constant 0 : i32
    return %c0_i32, %c0_i32_0 : i32, i32
  }
  func.func @transform_10(%arg0: i32) -> (i32, i32) {
    %c0_i32 = arith.constant 0 : i32
    %c0_i32_0 = arith.constant 0 : i32
    return %arg0, %c0_i32 : i32, i32
  }
}

</mosaic_0001>

<llo_original>
// kernel: tpu_custom_call.1
$region0: #{tpu_custom_call.1}
  #allocation0 [shape = 'u32[]', space=smem, size = 0x4, offset = 0x4, fixed_abs, tag = 'smem constant byte address 0x4 - core index']
  #allocation1 [shape = 'u32[144,128]{1,0:T(1,128)}', space=vmem, size = 0x12000, scoped, tag = 'internal scratch']
  %s0 = inlined_call_operand.vmem [shape: f32[1501,16], index: 0, kind: input, shape index: {}]
  %s1 = inlined_call_operand.vmem [shape: f32[1501,12], index: 1, kind: input, shape index: {}]
  %s2 = inlined_call_operand.vmem [shape: f32[1,12], index: 2, kind: input, shape index: {}]
  %s3 = inlined_call_operand.vmem [shape: f32[1,12], index: 3, kind: input, shape index: {}]
  %s4 = inlined_call_operand.vmem [shape: f32[16,128], index: 4, kind: input, shape index: {}]
  %s5 = inlined_call_operand.vmem [shape: f32[1,128], index: 5, kind: input, shape index: {}]
  %s6 = inlined_call_operand.vmem [shape: f32[12,64], index: 6, kind: input, shape index: {}]
  %s7 = inlined_call_operand.vmem [shape: f32[1,64], index: 7, kind: input, shape index: {}]
  %s8 = inlined_call_operand.vmem [shape: f32[64,128], index: 8, kind: input, shape index: {}]
  %s9 = inlined_call_operand.vmem [shape: f32[1,128], index: 9, kind: input, shape index: {}]
  %s10 = inlined_call_operand.hbm [shape: f32[1501,128], index: 10, kind: output, shape index: {}]
  %s11 = sld [smem:[#allocation0]]
  $region73: #{tpu_custom_call.1} parent=0
    _
  %s13 = ssub.s32 1, %s11
  %s14 = scalar_select 0, %s13, %s11
  $region1: #{tpu_custom_call.1} parent=0
    #allocation2 [shape = 'u8[524288]{0}', space=vmem, size = 0x80000, scoped, tag = 'output window, operand 0']
    #allocation3 [shape = 's32[2]{0}', space=sflag, size = 0x8, scoped, tag = 'scoped memory for tpu_custom_call.1']
    %15 = vsyncpa [#allocation3], 0
    %s16 = scalar_lea.sflag [#allocation3], 1
    %17 = vsyncpa %s16, 0
    loop: start=0, step=1, limit=5
    $region2: #{tpu_custom_call.1} parent=1 // loop_pre_header
      _
    $region3: #{tpu_custom_call.1} parent=1 // loop_header
      %s19 = sphi 0, %s23
      %p20 = scmp.ge.s32.totalorder %s19, 5
      %s29 = sphi 0, %s31
      %s32 = sphi 0, %s29
      %s33 = sphi 0, %s32
      %s49 = sphi 0, %s33
      %s55 = sphi 0, %s57
      %s58 = sphi 0, %s55
      %s59 = sphi 0, %s58
      %s75 = sphi 0, %s59
      %s79 = sphi 0, %s79
      %s81 = sphi 0, %s79
      %s82 = sphi 0, %s81
      %s96 = sphi 0, %s82
      %s100 = sphi 0, %s100
      %s102 = sphi 0, %s100
      %s103 = sphi 0, %s102
      %s117 = sphi 0, %s103
      %s121 = sphi 0, %s121
      %s123 = sphi 0, %s121
      %s124 = sphi 0, %s123
      %s138 = sphi 0, %s124
      %s142 = sphi 0, %s142
      %s144 = sphi 0, %s142
      %s145 = sphi 0, %s144
      %s159 = sphi 0, %s145
      %s163 = sphi 0, %s163
      %s165 = sphi 0, %s163
      %s166 = sphi 0, %s165
      %s180 = sphi 0, %s166
      %s184 = sphi 0, %s184
      %s186 = sphi 0, %s184
      %s187 = sphi 0, %s186
      %s201 = sphi 0, %s187
      %s205 = sphi 0, %s205
      %s207 = sphi 0, %s205
      %s208 = sphi 0, %s207
      %s222 = sphi 0, %s208
      %s226 = sphi 0, %s226
      %s228 = sphi 0, %s226
      %s229 = sphi 0, %s228
      %s243 = sphi 0, %s229
      %s249 = sphi 0, %s251
      %s252 = sphi 0, %s249
      %s253 = sphi 0, %s252
      %s269 = sphi 0, %s253
    $region4: #{tpu_custom_call.1} parent=1 // loop_header_branch
      %22 = sbr.rel (%p20) target = $region8
    $region5: #{tpu_custom_call.1} parent=1 // loop_body
      %s24 = ssub.s32 %s19, 1
      %s25 = ssub.s32 %s19, 2
      %s26 = sadd.s32 %s19, 1
      %s27 = ssub.s32 %s19, %s26
      %p28 = scmp.eq.s32.totalorder %s27, 0
      %s30 = sadd.s32 %s29, 1
      %s31 = scalar_select %p28, %s29, %s30
      %p34 = pneg %p28
      %p35 = scmp.eq.s32.totalorder %s19, 2
      %p36 = por %p34, %p35
      %p37 = scmp.ne.s32.totalorder %s29, %s32
      %p38 = scmp.eq.s32.totalorder %s19, 0
      %p39 = por %p37, %p38
      %p40 = scmp.ne.s32.totalorder %s29, %s32
      %p41 = scmp.eq.s32.totalorder %s24, 2
      %p42 = por %p40, %p41
      %p43 = scmp.ne.s32.totalorder %s32, %s33
      %p44 = scmp.eq.s32.totalorder %s24, 0
      %p45 = por %p43, %p44
      %p46 = scmp.ne.s32.totalorder %s32, %s33
      %p47 = scmp.eq.s32.totalorder %s25, 2
      %p48 = por %p46, %p47
      %p50 = scmp.ne.s32.totalorder %s33, %s49
      %p51 = scmp.eq.s32.totalorder %s25, 0
      %p52 = por %p50, %p51
      %s53 = ssub.s32 %s19, %s26
      %p54 = scmp.eq.s32.totalorder %s53, 0
      %s56 = sadd.s32 %s55, 1
      %s57 = scalar_select %p54, %s55, %s56
      %p60 = pneg %p54
      %p61 = scmp.eq.s32.totalorder %s19, 2
      %p62 = por %p60, %p61
      %p63 = scmp.ne.s32.totalorder %s55, %s58
      %p64 = scmp.eq.s32.totalorder %s19, 0
      %p65 = por %p63, %p64
      %p66 = scmp.ne.s32.totalorder %s55, %s58
      %p67 = scmp.eq.s32.totalorder %s24, 2
      %p68 = por %p66, %p67
      %p69 = scmp.ne.s32.totalorder %s58, %s59
      %p70 = scmp.eq.s32.totalorder %s24, 0
      %p71 = por %p69, %p70
      %p72 = scmp.ne.s32.totalorder %s58, %s59
      %p73 = scmp.eq.s32.totalorder %s25, 2
      %p74 = por %p72, %p73
      %p76 = scmp.ne.s32.totalorder %s59, %s75
      %p77 = scmp.eq.s32.totalorder %s25, 0
      %p78 = por %p76, %p77
      %s80 = sadd.s32 %s79, 1
      %p83 = scmp.eq.s32.totalorder %s19, 2
      %p84 = scmp.ne.s32.totalorder %s79, %s81
      %p85 = scmp.eq.s32.totalorder %s19, 0
      %p86 = por %p84, %p85
      %p87 = scmp.ne.s32.totalorder %s79, %s81
      %p88 = scmp.eq.s32.totalorder %s24, 2
      %p89 = por %p87, %p88
      %p90 = scmp.ne.s32.totalorder %s81, %s82
      %p91 = scmp.eq.s32.totalorder %s24, 0
      %p92 = por %p90, %p91
      %p93 = scmp.ne.s32.totalorder %s81, %s82
      %p94 = scmp.eq.s32.totalorder %s25, 2
      %p95 = por %p93, %p94
      %p97 = scmp.ne.s32.totalorder %s82, %s96
      %p98 = scmp.eq.s32.totalorder %s25, 0
      %p99 = por %p97, %p98
      %s101 = sadd.s32 %s100, 1
      %p104 = scmp.eq.s32.totalorder %s19, 2
      %p105 = scmp.ne.s32.totalorder %s100, %s102
      %p106 = scmp.eq.s32.totalorder %s19, 0
      %p107 = por %p105, %p106
      %p108 = scmp.ne.s32.totalorder %s100, %s102
      %p109 = scmp.eq.s32.totalorder %s24, 2
      %p110 = por %p108, %p109
      %p111 = scmp.ne.s32.totalorder %s102, %s103
      %p112 = scmp.eq.s32.totalorder %s24, 0
      %p113 = por %p111, %p112
      %p114 = scmp.ne.s32.totalorder %s102, %s103
      %p115 = scmp.eq.s32.totalorder %s25, 2
      %p116 = por %p114, %p115
      %p118 = scmp.ne.s32.totalorder %s103, %s117
      %p119 = scmp.eq.s32.totalorder %s25, 0
      %p120 = por %p118, %p119
      %s122 = sadd.s32 %s121, 1
      %p125 = scmp.eq.s32.totalorder %s19, 2
      %p126 = scmp.ne.s32.totalorder %s121, %s123
      %p127 = scmp.eq.s32.totalorder %s19, 0
      %p128 = por %p126, %p127
      %p129 = scmp.ne.s32.totalorder %s121, %s123
      %p130 = scmp.eq.s32.totalorder %s24, 2
      %p131 = por %p129, %p130
      %p132 = scmp.ne.s32.totalorder %s123, %s124
      %p133 = scmp.eq.s32.totalorder %s24, 0
      %p134 = por %p132, %p133
      %p135 = scmp.ne.s32.totalorder %s123, %s124
      %p136 = scmp.eq.s32.totalorder %s25, 2
      %p137 = por %p135, %p136
      %p139 = scmp.ne.s32.totalorder %s124, %s138
      %p140 = scmp.eq.s32.totalorder %s25, 0
      %p141 = por %p139, %p140
      %s143 = sadd.s32 %s142, 1
      %p146 = scmp.eq.s32.totalorder %s19, 2
      %p147 = scmp.ne.s32.totalorder %s142, %s144
      %p148 = scmp.eq.s32.totalorder %s19, 0
      %p149 = por %p147, %p148
      %p150 = scmp.ne.s32.totalorder %s142, %s144
      %p151 = scmp.eq.s32.totalorder %s24, 2
      %p152 = por %p150, %p151
      %p153 = scmp.ne.s32.totalorder %s144, %s145
      %p154 = scmp.eq.s32.totalorder %s24, 0
      %p155 = por %p153, %p154
      %p156 = scmp.ne.s32.totalorder %s144, %s145
      %p157 = scmp.eq.s32.totalorder %s25, 2
      %p158 = por %p156, %p157
      %p160 = scmp.ne.s32.totalorder %s145, %s159
      %p161 = scmp.eq.s32.totalorder %s25, 0
      %p162 = por %p160, %p161
      %s164 = sadd.s32 %s163, 1
      %p167 = scmp.eq.s32.totalorder %s19, 2
      %p168 = scmp.ne.s32.totalorder %s163, %s165
      %p169 = scmp.eq.s32.totalorder %s19, 0
      %p170 = por %p168, %p169
      %p171 = scmp.ne.s32.totalorder %s163, %s165
      %p172 = scmp.eq.s32.totalorder %s24, 2
      %p173 = por %p171, %p172
      %p174 = scmp.ne.s32.totalorder %s165, %s166
      %p175 = scmp.eq.s32.totalorder %s24, 0
      %p176 = por %p174, %p175
      %p177 = scmp.ne.s32.totalorder %s165, %s166
      %p178 = scmp.eq.s32.totalorder %s25, 2
      %p179 = por %p177, %p178
      %p181 = scmp.ne.s32.totalorder %s166, %s180
      %p182 = scmp.eq.s32.totalorder %s25, 0
      %p183 = por %p181, %p182
      %s185 = sadd.s32 %s184, 1
      %p188 = scmp.eq.s32.totalorder %s19, 2
      %p189 = scmp.ne.s32.totalorder %s184, %s186
      %p190 = scmp.eq.s32.totalorder %s19, 0
      %p191 = por %p189, %p190
      %p192 = scmp.ne.s32.totalorder %s184, %s186
      %p193 = scmp.eq.s32.totalorder %s24, 2
      %p194 = por %p192, %p193
      %p195 = scmp.ne.s32.totalorder %s186, %s187
      %p196 = scmp.eq.s32.totalorder %s24, 0
      %p197 = por %p195, %p196
      %p198 = scmp.ne.s32.totalorder %s186, %s187
      %p199 = scmp.eq.s32.totalorder %s25, 2
      %p200 = por %p198, %p199
      %p202 = scmp.ne.s32.totalorder %s187, %s201
      %p203 = scmp.eq.s32.totalorder %s25, 0
      %p204 = por %p202, %p203
      %s206 = sadd.s32 %s205, 1
      %p209 = scmp.eq.s32.totalorder %s19, 2
      %p210 = scmp.ne.s32.totalorder %s205, %s207
      %p211 = scmp.eq.s32.totalorder %s19, 0
      %p212 = por %p210, %p211
      %p213 = scmp.ne.s32.totalorder %s205, %s207
      %p214 = scmp.eq.s32.totalorder %s24, 2
      %p215 = por %p213, %p214
      %p216 = scmp.ne.s32.totalorder %s207, %s208
      %p217 = scmp.eq.s32.totalorder %s24, 0
      %p218 = por %p216, %p217
      %p219 = scmp.ne.s32.totalorder %s207, %s208
      %p220 = scmp.eq.s32.totalorder %s25, 2
      %p221 = por %p219, %p220
      %p223 = scmp.ne.s32.totalorder %s208, %s222
      %p224 = scmp.eq.s32.totalorder %s25, 0
      %p225 = por %p223, %p224
      %s227 = sadd.s32 %s226, 1
      %p230 = scmp.eq.s32.totalorder %s19, 2
      %p231 = scmp.ne.s32.totalorder %s226, %s228
      %p232 = scmp.eq.s32.totalorder %s19, 0
      %p233 = por %p231, %p232
      %p234 = scmp.ne.s32.totalorder %s226, %s228
      %p235 = scmp.eq.s32.totalorder %s24, 2
      %p236 = por %p234, %p235
      %p237 = scmp.ne.s32.totalorder %s228, %s229
      %p238 = scmp.eq.s32.totalorder %s24, 0
      %p239 = por %p237, %p238
      %p240 = scmp.ne.s32.totalorder %s228, %s229
      %p241 = scmp.eq.s32.totalorder %s25, 2
      %p242 = por %p240, %p241
      %p244 = scmp.ne.s32.totalorder %s229, %s243
      %p245 = scmp.eq.s32.totalorder %s25, 0
      %p246 = por %p244, %p245
      %s247 = ssub.s32 %s19, %s26
      %p248 = scmp.eq.s32.totalorder %s247, 0
      %s250 = sadd.s32 %s249, 1
      %s251 = scalar_select %p248, %s249, %s250
      %p254 = pneg %p248
      %p255 = scmp.eq.s32.totalorder %s19, 2
      %p256 = por %p254, %p255
      %p257 = scmp.ne.s32.totalorder %s249, %s252
      %p258 = scmp.eq.s32.totalorder %s19, 0
      %p259 = por %p257, %p258
      %p260 = scmp.ne.s32.totalorder %s249, %s252
      %p261 = scmp.eq.s32.totalorder %s24, 2
      %p262 = por %p260, %p261
      %p263 = scmp.ne.s32.totalorder %s252, %s253
      %p264 = scmp.eq.s32.totalorder %s24, 0
      %p265 = por %p263, %p264
      %p266 = scmp.ne.s32.totalorder %s252, %s253
      %p267 = scmp.eq.s32.totalorder %s25, 2
      %p268 = por %p266, %p267
      %p270 = scmp.ne.s32.totalorder %s253, %s269
      %p271 = scmp.eq.s32.totalorder %s25, 0
      %p272 = por %p270, %p271
      %p273 = scmp.le.s32.totalorder 1, %s19
      %p274 = scmp.lt.s32.totalorder %s19, 4
      %p275 = pnand %p273, %p274
      %p276 = pneg %p275
      // Predicated region
      $region9: #{tpu_custom_call.1} parent=5 // pred_check
        _
      $region10: #{tpu_custom_call.1} parent=5 // pred_check_branch
        %278 = sbr.rel (%p275) target = $region12
      $region11: #{tpu_custom_call.1} parent=5 // pred_region
        %s279 = ssub.s32 %s19, 1
        // Predicated region
        $region13: #{tpu_custom_call.1} parent=11 // pred_check
          %p280 = pneg %p92
        $region14: #{tpu_custom_call.1} parent=11 // pred_check_branch
          %282 = sbr.rel (%p280) target = $region16
        $region15: #{tpu_custom_call.1} parent=11 // pred_region
          _
        $region16: #{tpu_custom_call.1} parent=11 // pred_fallthru
          _
        // Predicated region
        $region17: #{tpu_custom_call.1} parent=11 // pred_check
          %p283 = pneg %p113
        $region18: #{tpu_custom_call.1} parent=11 // pred_check_branch
          %285 = sbr.rel (%p283) target = $region20
        $region19: #{tpu_custom_call.1} parent=11 // pred_region
          _
        $region20: #{tpu_custom_call.1} parent=11 // pred_fallthru
          _
        // Predicated region
        $region21: #{tpu_custom_call.1} parent=11 // pred_check
          %p286 = pneg %p134
        $region22: #{tpu_custom_call.1} parent=11 // pred_check_branch
          %288 = sbr.rel (%p286) target = $region24
        $region23: #{tpu_custom_call.1} parent=11 // pred_region
          _
        $region24: #{tpu_custom_call.1} parent=11 // pred_fallthru
          _
        // Predicated region
        $region25: #{tpu_custom_call.1} parent=11 // pred_check
          %p289 = pneg %p155
        $region26: #{tpu_custom_call.1} parent=11 // pred_check_branch
          %291 = sbr.rel (%p289) target = $region28
        $region27: #{tpu_custom_call.1} parent=11 // pred_region
          _
        $region28: #{tpu_custom_call.1} parent=11 // pred_fallthru
          _
        // Predicated region
        $region29: #{tpu_custom_call.1} parent=11 // pred_check
          %p292 = pneg %p176
        $region30: #{tpu_custom_call.1} parent=11 // pred_check_branch
          %294 = sbr.rel (%p292) target = $region32
        $region31: #{tpu_custom_call.1} parent=11 // pred_region
          _
        $region32: #{tpu_custom_call.1} parent=11 // pred_fallthru
          _
        // Predicated region
        $region33: #{tpu_custom_call.1} parent=11 // pred_check
          %p295 = pneg %p197
        $region34: #{tpu_custom_call.1} parent=11 // pred_check_branch
          %297 = sbr.rel (%p295) target = $region36
        $region35: #{tpu_custom_call.1} parent=11 // pred_region
          _
        $region36: #{tpu_custom_call.1} parent=11 // pred_fallthru
          _
        // Predicated region
        $region37: #{tpu_custom_call.1} parent=11 // pred_check
          %p298 = pneg %p218
        $region38: #{tpu_custom_call.1} parent=11 // pred_check_branch
          %300 = sbr.rel (%p298) target = $region40
        $region39: #{tpu_custom_call.1} parent=11 // pred_region
          _
        $region40: #{tpu_custom_call.1} parent=11 // pred_fallthru
          _
        // Predicated region
        $region41: #{tpu_custom_call.1} parent=11 // pred_check
          %p301 = pneg %p239
        $region42: #{tpu_custom_call.1} parent=11 // pred_check_branch
          %303 = sbr.rel (%p301) target = $region44
        $region43: #{tpu_custom_call.1} parent=11 // pred_region
          _
        $region44: #{tpu_custom_call.1} parent=11 // pred_fallthru
          _
      $region12: #{tpu_custom_call.1} parent=5 // pred_fallthru
        _
      %p304 = scmp.lt.s32.totalorder %s19, 3
      // Predicated region
      $region45: #{tpu_custom_call.1} parent=5 // pred_check
        %p305 = pneg %p304
      $region46: #{tpu_custom_call.1} parent=5 // pred_check_branch
        %307 = sbr.rel (%p305) target = $region48
      $region47: #{tpu_custom_call.1} parent=5 // pred_region
        // Predicated region
        $region49: #{tpu_custom_call.1} parent=47 // pred_check
          %p308 = pneg %p39
        $region50: #{tpu_custom_call.1} parent=47 // pred_check_branch
          %310 = sbr.rel (%p308) target = $region52
        $region51: #{tpu_custom_call.1} parent=47 // pred_region
          %s311 = smul.u32 64, %s19
          %s312 = ssub.s32 188, %s311
          %p313 = scmp.lt.s32.totalorder %s312, 64
          %s314 = scalar_select %p313, %s312, 64
          %s315 = smul.u32 128, %s314
          %p316 = scmp.lt.s32.totalorder %s311, 187
          %s317 = scalar_select %p316, %s311, 187
          %s318 = smul.addr %s317, 8
          %s319 = scalar_lea.vmem %s0, %s318
          %s320 = smul.u32 64, %s19
          %s321 = ssub.s32 188, %s320
          %p322 = scmp.lt.s32.totalorder %s321, 64
          %s323 = scalar_select %p322, %s321, 64
          %s324 = smul.u32 128, %s323
        $region52: #{tpu_custom_call.1} parent=47 // pred_fallthru
          _
        // Predicated region
        $region53: #{tpu_custom_call.1} parent=47 // pred_check
          %p325 = pneg %p65
        $region54: #{tpu_custom_call.1} parent=47 // pred_check_branch
          %327 = sbr.rel (%p325) target = $region56
        $region55: #{tpu_custom_call.1} parent=47 // pred_region
          %s328 = smul.u32 64, %s19
          %s329 = ssub.s32 188, %s328
          %p330 = scmp.lt.s32.totalorder %s329, 64
          %s331 = scalar_select %p330, %s329, 64
          %s332 = smul.u32 128, %s331
          %p333 = scmp.lt.s32.totalorder %s328, 187
          %s334 = scalar_select %p333, %s328, 187
          %s335 = smul.addr %s334, 8
          %s336 = scalar_lea.vmem %s1, %s335
          %s337 = smul.u32 64, %s19
          %s338 = ssub.s32 188, %s337
          %p339 = scmp.lt.s32.totalorder %s338, 64
          %s340 = scalar_select %p339, %s338, 64
          %s341 = smul.u32 128, %s340
        $region56: #{tpu_custom_call.1} parent=47 // pred_fallthru
          _
      $region48: #{tpu_custom_call.1} parent=5 // pred_fallthru
        _
      %p342 = scmp.le.s32.totalorder 1, %s19
      %p343 = scmp.lt.s32.totalorder %s19, 4
      %p344 = pnand %p342, %p343
      %p345 = pneg %p344
      // Predicated region
      $region57: #{tpu_custom_call.1} parent=5 // pred_check
        _
      $region58: #{tpu_custom_call.1} parent=5 // pred_check_branch
        %347 = sbr.rel (%p344) target = $region60
      $region59: #{tpu_custom_call.1} parent=5 // pred_region
        %s348 = ssub.s32 %s19, 1
        %s349 = smul.u32 64, %s24
        %s350 = ssub.s32 188, %s349
        %p351 = scmp.lt.s32.totalorder %s350, 64
        %s352 = scalar_select %p351, %s350, 64
        %s353 = smul.u32 128, %s352
        %p354 = scmp.lt.s32.totalorder %s349, 187
        %s355 = scalar_select %p354, %s349, 187
        %s356 = smul.addr %s355, 8
        %s357 = scalar_lea.vmem %s0, %s356
        %p358 = pneg %p45
        %p359 = pneg %p42
        %s360 = smul.u32 64, %s24
        %s361 = ssub.s32 188, %s360
        %p362 = scmp.lt.s32.totalorder %s361, 64
        %s363 = scalar_select %p362, %s361, 64
        %s364 = smul.u32 128, %s363
        %p365 = scmp.lt.s32.totalorder %s360, 187
        %s366 = scalar_select %p365, %s360, 187
        %s367 = smul.addr %s366, 8
        %s368 = scalar_lea.vmem %s1, %s367
        %p369 = pneg %p71
        %p370 = pneg %p68
        %p371 = pneg %p92
        %p372 = pneg %p89
        %p373 = pneg %p113
        %p374 = pneg %p110
        %p375 = pneg %p134
        %p376 = pneg %p131
        %p377 = pneg %p155
        %p378 = pneg %p152
        %p379 = pneg %p176
        %p380 = pneg %p173
        %p381 = pneg %p197
        %p382 = pneg %p194
        %p383 = pneg %p218
        %p384 = pneg %p215
        %p385 = pneg %p239
        %p386 = pneg %p236
        %p387 = pneg %p265
        %p388 = pneg %p262
        %s389 = sand.u32 %s252, 1
        %s390 = scalar_lea.sflag [#allocation3], %s389
        %s391 = sand.u32 %s252, 1
        %s392 = smul.addr %s391, 512
        %s393 = scalar_lea.vmem [#allocation2], %s392
        %s394 = smul.u32 64, %s24
        %s395 = ssub.s32 188, %s394
        %p396 = scmp.lt.s32.totalorder %s395, 64
        %s397 = scalar_select %p396, %s395, 64
        %s398 = smul.u32 128, %s397
        %p399 = scmp.lt.s32.totalorder %s394, 187
        %s400 = scalar_select %p399, %s394, 187
        %s401 = smul.addr %s400, 8
        %s402 = scalar_lea.vmem %s0, %s401
        %s403 = smul.u32 64, %s24
        %s404 = ssub.s32 188, %s403
        %p405 = scmp.lt.s32.totalorder %s404, 64
        %s406 = scalar_select %p405, %s404, 64
        %s407 = smul.u32 128, %s406
        %s408 = smul.u32 64, %s24
        %s409 = ssub.s32 188, %s408
        %p410 = scmp.lt.s32.totalorder %s409, 64
        %s411 = scalar_select %p410, %s409, 64
        %s412 = smul.u32 128, %s411
        %p413 = scmp.lt.s32.totalorder %s408, 187
        %s414 = scalar_select %p413, %s408, 187
        %s415 = smul.addr %s414, 8
        %s416 = scalar_lea.vmem %s1, %s415
        %s417 = smul.u32 64, %s24
        %s418 = ssub.s32 188, %s417
        %p419 = scmp.lt.s32.totalorder %s418, 64
        %s420 = scalar_select %p419, %s418, 64
        %s421 = smul.u32 128, %s420
        %s422 = smul.u32 64, %s24
        %s423 = ssub.s32 188, %s422
        %p424 = scmp.lt.s32.totalorder %s423, 64
        %s425 = scalar_select %p424, %s423, 64
        %s426 = smul.u32 128, %s425
        %v427 = vld [vmem:[%s416] sm:$0xff]
        %v428 = vld [vmem:[%s416 + $0x8] sm:$0xff]
        %v429 = vld [vmem:[%s416 + $0x10] sm:$0xff]
        %v430 = vld [vmem:[%s416 + $0x18] sm:$0xff]
        %v431 = vld [vmem:[%s416 + $0x20] sm:$0xff]
        %v432 = vld [vmem:[%s416 + $0x28] sm:$0xff]
        %v433 = vld [vmem:[%s416 + $0x30] sm:$0xff]
        %v434 = vld [vmem:[%s416 + $0x38] sm:$0xff]
        %v435 = vld [vmem:[%s416 + $0x40] sm:$0xff]
        %v436 = vld [vmem:[%s416 + $0x48] sm:$0xff]
        %v437 = vld [vmem:[%s416 + $0x50] sm:$0xff]
        %v438 = vld [vmem:[%s416 + $0x58] sm:$0xff]
        %v439 = vld [vmem:[%s416 + $0x60] sm:$0xff]
        %v440 = vld [vmem:[%s416 + $0x68] sm:$0xff]
        %v441 = vld [vmem:[%s416 + $0x70] sm:$0xff]
        %v442 = vld [vmem:[%s416 + $0x78] sm:$0xff]
        %v443 = vld [vmem:[%s416 + $0x80] sm:$0xff]
        %v444 = vld [vmem:[%s416 + $0x88] sm:$0xff]
        %v445 = vld [vmem:[%s416 + $0x90] sm:$0xff]
        %v446 = vld [vmem:[%s416 + $0x98] sm:$0xff]
        %v447 = vld [vmem:[%s416 + $0xa0] sm:$0xff]
        %v448 = vld [vmem:[%s416 + $0xa8] sm:$0xff]
        %v449 = vld [vmem:[%s416 + $0xb0] sm:$0xff]
        %v450 = vld [vmem:[%s416 + $0xb8] sm:$0xff]
        %v451 = vld [vmem:[%s416 + $0xc0] sm:$0xff]
        %v452 = vld [vmem:[%s416 + $0xc8] sm:$0xff]
        %v453 = vld [vmem:[%s416 + $0xd0] sm:$0xff]
        %v454 = vld [vmem:[%s416 + $0xd8] sm:$0xff]
        %v455 = vld [vmem:[%s416 + $0xe0] sm:$0xff]
        %v456 = vld [vmem:[%s416 + $0xe8] sm:$0xff]
        %v457 = vld [vmem:[%s416 + $0xf0] sm:$0xff]
        %v458 = vld [vmem:[%s416 + $0xf8] sm:$0xff]
        %v459 = vld [vmem:[%s416 + $0x100] sm:$0xff]
        %v460 = vld [vmem:[%s416 + $0x108] sm:$0xff]
        %v461 = vld [vmem:[%s416 + $0x110] sm:$0xff]
        %v462 = vld [vmem:[%s416 + $0x118] sm:$0xff]
        %v463 = vld [vmem:[%s416 + $0x120] sm:$0xff]
        %v464 = vld [vmem:[%s416 + $0x128] sm:$0xff]
        %v465 = vld [vmem:[%s416 + $0x130] sm:$0xff]
        %v466 = vld [vmem:[%s416 + $0x138] sm:$0xff]
        %v467 = vld [vmem:[%s416 + $0x140] sm:$0xff]
        %v468 = vld [vmem:[%s416 + $0x148] sm:$0xff]
        %v469 = vld [vmem:[%s416 + $0x150] sm:$0xff]
        %v470 = vld [vmem:[%s416 + $0x158] sm:$0xff]
        %v471 = vld [vmem:[%s416 + $0x160] sm:$0xff]
        %v472 = vld [vmem:[%s416 + $0x168] sm:$0xff]
        %v473 = vld [vmem:[%s416 + $0x170] sm:$0xff]
        %v474 = vld [vmem:[%s416 + $0x178] sm:$0xff]
        %v475 = vld [vmem:[%s416 + $0x180] sm:$0xff]
        %v476 = vld [vmem:[%s416 + $0x188] sm:$0xff]
        %v477 = vld [vmem:[%s416 + $0x190] sm:$0xff]
        %v478 = vld [vmem:[%s416 + $0x198] sm:$0xff]
        %v479 = vld [vmem:[%s416 + $0x1a0] sm:$0xff]
        %v480 = vld [vmem:[%s416 + $0x1a8] sm:$0xff]
        %v481 = vld [vmem:[%s416 + $0x1b0] sm:$0xff]
        %v482 = vld [vmem:[%s416 + $0x1b8] sm:$0xff]
        %v483 = vld [vmem:[%s416 + $0x1c0] sm:$0xff]
        %v484 = vld [vmem:[%s416 + $0x1c8] sm:$0xff]
        %v485 = vld [vmem:[%s416 + $0x1d0] sm:$0xff]
        %v486 = vld [vmem:[%s416 + $0x1d8] sm:$0xff]
        %v487 = vld [vmem:[%s416 + $0x1e0] sm:$0xff]
        %v488 = vld [vmem:[%s416 + $0x1e8] sm:$0xff]
        %v489 = vld [vmem:[%s416 + $0x1f0] sm:$0xff]
        %v490 = vld [vmem:[%s416 + $0x1f8] sm:$0xff]
        %v491 = vld [vmem:[%s2] sm:$0x1]
        %v493 = vlaneseq
        %v494 = vshrl.u32 %v493, 7
        %v495 = vsub.s32 0, %v494
        %v496 = vrot.slane %v491, %v495
        %v498 = vmul.f32 %v427, %v496
        %v499 = vmul.f32 %v428, %v496
        %v500 = vmul.f32 %v429, %v496
        %v501 = vmul.f32 %v430, %v496
        %v502 = vmul.f32 %v431, %v496
        %v503 = vmul.f32 %v432, %v496
        %v504 = vmul.f32 %v433, %v496
        %v505 = vmul.f32 %v434, %v496
        %v506 = vmul.f32 %v435, %v496
        %v507 = vmul.f32 %v436, %v496
        %v508 = vmul.f32 %v437, %v496
        %v509 = vmul.f32 %v438, %v496
        %v510 = vmul.f32 %v439, %v496
        %v511 = vmul.f32 %v440, %v496
        %v512 = vmul.f32 %v441, %v496
        %v513 = vmul.f32 %v442, %v496
        %v514 = vmul.f32 %v443, %v496
        %v515 = vmul.f32 %v444, %v496
        %v516 = vmul.f32 %v445, %v496
        %v517 = vmul.f32 %v446, %v496
        %v518 = vmul.f32 %v447, %v496
        %v519 = vmul.f32 %v448, %v496
        %v520 = vmul.f32 %v449, %v496
        %v521 = vmul.f32 %v450, %v496
        %v522 = vmul.f32 %v451, %v496
        %v523 = vmul.f32 %v452, %v496
        %v524 = vmul.f32 %v453, %v496
        %v525 = vmul.f32 %v454, %v496
        %v526 = vmul.f32 %v455, %v496
        %v527 = vmul.f32 %v456, %v496
        %v528 = vmul.f32 %v457, %v496
        %v529 = vmul.f32 %v458, %v496
        %v530 = vmul.f32 %v459, %v496
        %v531 = vmul.f32 %v460, %v496
        %v532 = vmul.f32 %v461, %v496
        %v533 = vmul.f32 %v462, %v496
        %v534 = vmul.f32 %v463, %v496
        %v535 = vmul.f32 %v464, %v496
        %v536 = vmul.f32 %v465, %v496
        %v537 = vmul.f32 %v466, %v496
        %v538 = vmul.f32 %v467, %v496
        %v539 = vmul.f32 %v468, %v496
        %v540 = vmul.f32 %v469, %v496
        %v541 = vmul.f32 %v470, %v496
        %v542 = vmul.f32 %v471, %v496
        %v543 = vmul.f32 %v472, %v496
        %v544 = vmul.f32 %v473, %v496
        %v545 = vmul.f32 %v474, %v496
        %v546 = vmul.f32 %v475, %v496
        %v547 = vmul.f32 %v476, %v496
        %v548 = vmul.f32 %v477, %v496
        %v549 = vmul.f32 %v478, %v496
        %v550 = vmul.f32 %v479, %v496
        %v551 = vmul.f32 %v480, %v496
        %v552 = vmul.f32 %v481, %v496
        %v553 = vmul.f32 %v482, %v496
        %v554 = vmul.f32 %v483, %v496
        %v555 = vmul.f32 %v484, %v496
        %v556 = vmul.f32 %v485, %v496
        %v557 = vmul.f32 %v486, %v496
        %v558 = vmul.f32 %v487, %v496
        %v559 = vmul.f32 %v488, %v496
        %v560 = vmul.f32 %v489, %v496
        %v561 = vmul.f32 %v490, %v496
        %v562 = vld [vmem:[%s3] sm:$0x1]
        %v564 = vlaneseq
        %v565 = vshrl.u32 %v564, 7
        %v566 = vsub.s32 0, %v565
        %v567 = vrot.slane %v562, %v566
        %v569 = vadd.f32 %v498, %v567
        %v570 = vadd.f32 %v499, %v567
        %v571 = vadd.f32 %v500, %v567
        %v572 = vadd.f32 %v501, %v567
        %v573 = vadd.f32 %v502, %v567
        %v574 = vadd.f32 %v503, %v567
        %v575 = vadd.f32 %v504, %v567
        %v576 = vadd.f32 %v505, %v567
        %v577 = vadd.f32 %v506, %v567
        %v578 = vadd.f32 %v507, %v567
        %v579 = vadd.f32 %v508, %v567
        %v580 = vadd.f32 %v509, %v567
        %v581 = vadd.f32 %v510, %v567
        %v582 = vadd.f32 %v511, %v567
        %v583 = vadd.f32 %v512, %v567
        %v584 = vadd.f32 %v513, %v567
        %v585 = vadd.f32 %v514, %v567
        %v586 = vadd.f32 %v515, %v567
        %v587 = vadd.f32 %v516, %v567
        %v588 = vadd.f32 %v517, %v567
        %v589 = vadd.f32 %v518, %v567
        %v590 = vadd.f32 %v519, %v567
        %v591 = vadd.f32 %v520, %v567
        %v592 = vadd.f32 %v521, %v567
        %v593 = vadd.f32 %v522, %v567
        %v594 = vadd.f32 %v523, %v567
        %v595 = vadd.f32 %v524, %v567
        %v596 = vadd.f32 %v525, %v567
        %v597 = vadd.f32 %v526, %v567
        %v598 = vadd.f32 %v527, %v567
        %v599 = vadd.f32 %v528, %v567
        %v600 = vadd.f32 %v529, %v567
        %v601 = vadd.f32 %v530, %v567
        %v602 = vadd.f32 %v531, %v567
        %v603 = vadd.f32 %v532, %v567
        %v604 = vadd.f32 %v533, %v567
        %v605 = vadd.f32 %v534, %v567
        %v606 = vadd.f32 %v535, %v567
        %v607 = vadd.f32 %v536, %v567
        %v608 = vadd.f32 %v537, %v567
        %v609 = vadd.f32 %v538, %v567
        %v610 = vadd.f32 %v539, %v567
        %v611 = vadd.f32 %v540, %v567
        %v612 = vadd.f32 %v541, %v567
        %v613 = vadd.f32 %v542, %v567
        %v614 = vadd.f32 %v543, %v567
        %v615 = vadd.f32 %v544, %v567
        %v616 = vadd.f32 %v545, %v567
        %v617 = vadd.f32 %v546, %v567
        %v618 = vadd.f32 %v547, %v567
        %v619 = vadd.f32 %v548, %v567
        %v620 = vadd.f32 %v549, %v567
        %v621 = vadd.f32 %v550, %v567
        %v622 = vadd.f32 %v551, %v567
        %v623 = vadd.f32 %v552, %v567
        %v624 = vadd.f32 %v553, %v567
        %v625 = vadd.f32 %v554, %v567
        %v626 = vadd.f32 %v555, %v567
        %v627 = vadd.f32 %v556, %v567
        %v628 = vadd.f32 %v557, %v567
        %v629 = vadd.f32 %v558, %v567
        %v630 = vadd.f32 %v559, %v567
        %v631 = vadd.f32 %v560, %v567
        %v632 = vadd.f32 %v561, %v567
        %v633 = vld [vmem:[%s402] sm:$0xff]
        %v634 = vld [vmem:[%s402 + $0x8] sm:$0xff]
        %v635 = vld [vmem:[%s402 + $0x10] sm:$0xff]
        %v636 = vld [vmem:[%s402 + $0x18] sm:$0xff]
        %v637 = vld [vmem:[%s402 + $0x20] sm:$0xff]
        %v638 = vld [vmem:[%s402 + $0x28] sm:$0xff]
        %v639 = vld [vmem:[%s402 + $0x30] sm:$0xff]
        %v640 = vld [vmem:[%s402 + $0x38] sm:$0xff]
        %v641 = vld [vmem:[%s402 + $0x40] sm:$0xff]
        %v642 = vld [vmem:[%s402 + $0x48] sm:$0xff]
        %v643 = vld [vmem:[%s402 + $0x50] sm:$0xff]
        %v644 = vld [vmem:[%s402 + $0x58] sm:$0xff]
        %v645 = vld [vmem:[%s402 + $0x60] sm:$0xff]
        %v646 = vld [vmem:[%s402 + $0x68] sm:$0xff]
        %v647 = vld [vmem:[%s402 + $0x70] sm:$0xff]
        %v648 = vld [vmem:[%s402 + $0x78] sm:$0xff]
        %v649 = vld [vmem:[%s402 + $0x80] sm:$0xff]
        %v650 = vld [vmem:[%s402 + $0x88] sm:$0xff]
        %v651 = vld [vmem:[%s402 + $0x90] sm:$0xff]
        %v652 = vld [vmem:[%s402 + $0x98] sm:$0xff]
        %v653 = vld [vmem:[%s402 + $0xa0] sm:$0xff]
        %v654 = vld [vmem:[%s402 + $0xa8] sm:$0xff]
        %v655 = vld [vmem:[%s402 + $0xb0] sm:$0xff]
        %v656 = vld [vmem:[%s402 + $0xb8] sm:$0xff]
        %v657 = vld [vmem:[%s402 + $0xc0] sm:$0xff]
        %v658 = vld [vmem:[%s402 + $0xc8] sm:$0xff]
        %v659 = vld [vmem:[%s402 + $0xd0] sm:$0xff]
        %v660 = vld [vmem:[%s402 + $0xd8] sm:$0xff]
        %v661 = vld [vmem:[%s402 + $0xe0] sm:$0xff]
        %v662 = vld [vmem:[%s402 + $0xe8] sm:$0xff]
        %v663 = vld [vmem:[%s402 + $0xf0] sm:$0xff]
        %v664 = vld [vmem:[%s402 + $0xf8] sm:$0xff]
        %v665 = vld [vmem:[%s402 + $0x100] sm:$0xff]
        %v666 = vld [vmem:[%s402 + $0x108] sm:$0xff]
        %v667 = vld [vmem:[%s402 + $0x110] sm:$0xff]
        %v668 = vld [vmem:[%s402 + $0x118] sm:$0xff]
        %v669 = vld [vmem:[%s402 + $0x120] sm:$0xff]
        %v670 = vld [vmem:[%s402 + $0x128] sm:$0xff]
        %v671 = vld [vmem:[%s402 + $0x130] sm:$0xff]
        %v672 = vld [vmem:[%s402 + $0x138] sm:$0xff]
        %v673 = vld [vmem:[%s402 + $0x140] sm:$0xff]
        %v674 = vld [vmem:[%s402 + $0x148] sm:$0xff]
        %v675 = vld [vmem:[%s402 + $0x150] sm:$0xff]
        %v676 = vld [vmem:[%s402 + $0x158] sm:$0xff]
        %v677 = vld [vmem:[%s402 + $0x160] sm:$0xff]
        %v678 = vld [vmem:[%s402 + $0x168] sm:$0xff]
        %v679 = vld [vmem:[%s402 + $0x170] sm:$0xff]
        %v680 = vld [vmem:[%s402 + $0x178] sm:$0xff]
        %v681 = vld [vmem:[%s402 + $0x180] sm:$0xff]
        %v682 = vld [vmem:[%s402 + $0x188] sm:$0xff]
        %v683 = vld [vmem:[%s402 + $0x190] sm:$0xff]
        %v684 = vld [vmem:[%s402 + $0x198] sm:$0xff]
        %v685 = vld [vmem:[%s402 + $0x1a0] sm:$0xff]
        %v686 = vld [vmem:[%s402 + $0x1a8] sm:$0xff]
        %v687 = vld [vmem:[%s402 + $0x1b0] sm:$0xff]
        %v688 = vld [vmem:[%s402 + $0x1b8] sm:$0xff]
        %v689 = vld [vmem:[%s402 + $0x1c0] sm:$0xff]
        %v690 = vld [vmem:[%s402 + $0x1c8] sm:$0xff]
        %v691 = vld [vmem:[%s402 + $0x1d0] sm:$0xff]
        %v692 = vld [vmem:[%s402 + $0x1d8] sm:$0xff]
        %v693 = vld [vmem:[%s402 + $0x1e0] sm:$0xff]
        %v694 = vld [vmem:[%s402 + $0x1e8] sm:$0xff]
        %v695 = vld [vmem:[%s402 + $0x1f0] sm:$0xff]
        %v696 = vld [vmem:[%s402 + $0x1f8] sm:$0xff]
        %v697 = vld [vmem:[%s4] sm:$0xff]
        %v698 = vld [vmem:[%s4 + $0x8] sm:$0xff]
        %v699 = vld [vmem:[%s5] sm:$0x1]
        %v701 = vlaneseq
        %v702 = vshrl.u32 %v701, 7
        %v703 = vsub.s32 0, %v702
        %v704 = vrot.slane %v699, %v703
        %vm706 = vcmask 130048
        %v708 = vsel %vm706, %v633, 0
        %v711 = vsel %vm706, %v634, 0
        %v714 = vsel %vm706, %v635, 0
        %v717 = vsel %vm706, %v636, 0
        %v720 = vsel %vm706, %v637, 0
        %v723 = vsel %vm706, %v638, 0
        %v726 = vsel %vm706, %v639, 0
        %v729 = vsel %vm706, %v640, 0
        %v732 = vsel %vm706, %v641, 0
        %v735 = vsel %vm706, %v642, 0
        %v738 = vsel %vm706, %v643, 0
        %v741 = vsel %vm706, %v644, 0
        %v744 = vsel %vm706, %v645, 0
        %v747 = vsel %vm706, %v646, 0
        %v750 = vsel %vm706, %v647, 0
        %v753 = vsel %vm706, %v648, 0
        %v756 = vsel %vm706, %v649, 0
        %v759 = vsel %vm706, %v650, 0
        %v762 = vsel %vm706, %v651, 0
        %v765 = vsel %vm706, %v652, 0
        %v768 = vsel %vm706, %v653, 0
        %v771 = vsel %vm706, %v654, 0
        %v774 = vsel %vm706, %v655, 0
        %v777 = vsel %vm706, %v656, 0
        %v780 = vsel %vm706, %v657, 0
        %v783 = vsel %vm706, %v658, 0
        %v786 = vsel %vm706, %v659, 0
        %v789 = vsel %vm706, %v660, 0
        %v792 = vsel %vm706, %v661, 0
        %v795 = vsel %vm706, %v662, 0
        %v798 = vsel %vm706, %v663, 0
        %v801 = vsel %vm706, %v664, 0
        %v804 = vsel %vm706, %v665, 0
        %v807 = vsel %vm706, %v666, 0
        %v810 = vsel %vm706, %v667, 0
        %v813 = vsel %vm706, %v668, 0
        %v816 = vsel %vm706, %v669, 0
        %v819 = vsel %vm706, %v670, 0
        %v822 = vsel %vm706, %v671, 0
        %v825 = vsel %vm706, %v672, 0
        %v828 = vsel %vm706, %v673, 0
        %v831 = vsel %vm706, %v674, 0
        %v834 = vsel %vm706, %v675, 0
        %v837 = vsel %vm706, %v676, 0
        %v840 = vsel %vm706, %v677, 0
        %v843 = vsel %vm706, %v678, 0
        %v846 = vsel %vm706, %v679, 0
        %v849 = vsel %vm706, %v680, 0
        %v852 = vsel %vm706, %v681, 0
        %v855 = vsel %vm706, %v682, 0
        %v858 = vsel %vm706, %v683, 0
        %v861 = vsel %vm706, %v684, 0
        %v864 = vsel %vm706, %v685, 0
        %v867 = vsel %vm706, %v686, 0
        %v870 = vsel %vm706, %v687, 0
        %v873 = vsel %vm706, %v688, 0
        %v876 = vsel %vm706, %v689, 0
        %v879 = vsel %vm706, %v690, 0
        %v882 = vsel %vm706, %v691, 0
        %v885 = vsel %vm706, %v692, 0
        %v888 = vsel %vm706, %v693, 0
        %v891 = vsel %vm706, %v694, 0
        %v894 = vsel %vm706, %v695, 0
        %v897 = vsel %vm706, %v696, 0
        %899 = vmatprep.subr.mxu0 0.0
        %900 = vmatpush1.msra.mxu0 %v697
        %901 = vmatprep.subr.mxu0 0.0
        %902 = vmatpush1.msra.mxu0 %v698
        %903 = vmatprep.subr.mxu0 0.0
        %904 = vmatpush1.msra.mxu0 0.0
        %905 = vmatprep.subr.mxu0 0.0
        %906 = vmatpush1.msra.mxu0 0.0
        %907 = vmatprep.subr.mxu0 0.0
        %908 = vmatpush1.msra.mxu0 0.0
        %909 = vmatprep.subr.mxu0 0.0
        %910 = vmatpush1.msra.mxu0 0.0
        %911 = vmatprep.subr.mxu0 0.0
        %912 = vmatpush1.msra.mxu0 0.0
        %913 = vmatprep.subr.mxu0 0.0
        %914 = vmatpush1.msra.mxu0 0.0
        %915 = vmatprep.subr.mxu0 0.0
        %916 = vmatpush1.msra.mxu0 0.0
        %917 = vmatprep.subr.mxu0 0.0
        %918 = vmatpush1.msra.mxu0 0.0
        %919 = vmatprep.subr.mxu0 0.0
        %920 = vmatpush1.msra.mxu0 0.0
        %921 = vmatprep.subr.mxu0 0.0
        %922 = vmatpush1.msra.mxu0 0.0
        %923 = vmatprep.subr.mxu0 0.0
        %924 = vmatpush1.msra.mxu0 0.0
        %925 = vmatprep.subr.mxu0 0.0
        %926 = vmatpush1.msra.mxu0 0.0
        %927 = vmatprep.subr.mxu0 0.0
        %928 = vmatpush1.msra.mxu0 0.0
        %929 = vmatprep.subr.mxu0 0.0
        %930 = vmatpush1.msra.mxu0 0.0
        %931 = vmatprep.subr.mxu0 0.0
        %932 = vmatpush1.msra.mxu0 0.0
        %933 = vmatprep.subr.mxu0 0.0
        %934 = vmatpush1.msra.mxu0 0.0
        %935 = vmatprep.subr.mxu0 0.0
        %936 = vmatpush1.msra.mxu0 0.0
        %937 = vmatprep.subr.mxu0 0.0
        %938 = vmatpush1.msra.mxu0 0.0
        %939 = vmatprep.subr.mxu0 0.0
        %940 = vmatpush1.msra.mxu0 0.0
        %941 = vmatprep.subr.mxu0 0.0
        %942 = vmatpush1.msra.mxu0 0.0
        %943 = vmatprep.subr.mxu0 0.0
        %944 = vmatpush1.msra.mxu0 0.0
        %945 = vmatprep.subr.mxu0 0.0
        %946 = vmatpush1.msra.mxu0 0.0
        %947 = vmatprep.subr.mxu0 0.0
        %948 = vmatpush1.msra.mxu0 0.0
        %949 = vmatprep.subr.mxu0 0.0
        %950 = vmatpush1.msra.mxu0 0.0
        %951 = vmatprep.subr.mxu0 0.0
        %952 = vmatpush1.msra.mxu0 0.0
        %953 = vmatprep.subr.mxu0 0.0
        %954 = vmatpush1.msra.mxu0 0.0
        %955 = vmatprep.subr.mxu0 0.0
        %956 = vmatpush1.msra.mxu0 0.0
        %957 = vmatprep.subr.mxu0 0.0
        %958 = vmatpush1.msra.mxu0 0.0
        %959 = vmatprep.subr.mxu0 0.0
        %960 = vmatpush1.msra.mxu0 0.0
        %961 = vmatprep.subr.mxu0 0.0
        %962 = vmatpush1.msra.mxu0 0.0
        %963 = vmatprep.mubr.f32.mxu0 0.0
        %964 = vmatmul.mubr.f32.gmra.mrb[0].mxu0 %v708
        %v965 = vpop.f32.mrb[0].mxu0
        %v966 = vadd.f32 %v704, %v965
        %v967 = vpop.f32.mrb[0].mxu0
        %968 = vmatprep.mubr.f32.mxu0 0.0
        %969 = vmatmul.mubr.f32.gmra.mrb[0].mxu0 %v711
        %v970 = vpop.f32.mrb[0].mxu0
        %v971 = vadd.f32 %v704, %v970
        %v972 = vpop.f32.mrb[0].mxu0
        %973 = vmatprep.mubr.f32.mxu0 0.0
        %974 = vmatmul.mubr.f32.gmra.mrb[0].mxu0 %v714
        %v975 = vpop.f32.mrb[0].mxu0
        %v976 = vadd.f32 %v704, %v975
        %v977 = vpop.f32.mrb[0].mxu0
        %978 = vmatprep.mubr.f32.mxu0 0.0
        %979 = vmatmul.mubr.f32.gmra.mrb[0].mxu0 %v717
        %v980 = vpop.f32.mrb[0].mxu0
        %v981 = vadd.f32 %v704, %v980
        %v982 = vpop.f32.mrb[0].mxu0
        %983 = vmatprep.mubr.f32.mxu0 0.0
        %984 = vmatmul.mubr.f32.gmra.mrb[0].mxu0 %v720
        %v985 = vpop.f32.mrb[0].mxu0
        %v986 = vadd.f32 %v704, %v985
        %v987 = vpop.f32.mrb[0].mxu0
        %988 = vmatprep.mubr.f32.mxu0 0.0
        %989 = vmatmul.mubr.f32.gmra.mrb[0].mxu0 %v723
        %v990 = vpop.f32.mrb[0].mxu0
        %v991 = vadd.f32 %v704, %v990
        %v992 = vpop.f32.mrb[0].mxu0
        %993 = vmatprep.mubr.f32.mxu0 0.0
        %994 = vmatmul.mubr.f32.gmra.mrb[0].mxu0 %v726
        %v995 = vpop.f32.mrb[0].mxu0
        %v996 = vadd.f32 %v704, %v995
        %v997 = vpop.f32.mrb[0].mxu0
        %998 = vmatprep.mubr.f32.mxu0 0.0
        %999 = vmatmul.mubr.f32.gmra.mrb[0].mxu0 %v729
        %v1000 = vpop.f32.mrb[0].mxu0
        %v1001 = vadd.f32 %v704, %v1000
        %v1002 = vpop.f32.mrb[0].mxu0
        %1003 = vmatprep.mubr.f32.mxu0 0.0
        %1004 = vmatmul.mubr.f32.gmra.mrb[0].mxu0 %v732
        %v1005 = vpop.f32.mrb[0].mxu0
        %v1006 = vadd.f32 %v704, %v1005
        %v1007 = vpop.f32.mrb[0].mxu0
        %1008 = vmatprep.mubr.f32.mxu0 0.0
        %1009 = vmatmul.mubr.f32.gmra.mrb[0].mxu0 %v735
        %v1010 = vpop.f32.mrb[0].mxu0
        %v1011 = vadd.f32 %v704, %v1010
        %v1012 = vpop.f32.mrb[0].mxu0
        %1013 = vmatprep.mubr.f32.mxu0 0.0
        %1014 = vmatmul.mubr.f32.gmra.mrb[0].mxu0 %v738
        %v1015 = vpop.f32.mrb[0].mxu0
        %v1016 = vadd.f32 %v704, %v1015
        %v1017 = vpop.f32.mrb[0].mxu0
        %1018 = vmatprep.mubr.f32.mxu0 0.0
        %1019 = vmatmul.mubr.f32.gmra.mrb[0].mxu0 %v741
        %v1020 = vpop.f32.mrb[0].mxu0
        %v1021 = vadd.f32 %v704, %v1020
        %v1022 = vpop.f32.mrb[0].mxu0
        %1023 = vmatprep.mubr.f32.mxu0 0.0
        %1024 = vmatmul.mubr.f32.gmra.mrb[0].mxu0 %v744
        %v1025 = vpop.f32.mrb[0].mxu0
        %v1026 = vadd.f32 %v704, %v1025
        %v1027 = vpop.f32.mrb[0].mxu0
        %1028 = vmatprep.mubr.f32.mxu0 0.0
        %1029 = vmatmul.mubr.f32.gmra.mrb[0].mxu0 %v747
        %v1030 = vpop.f32.mrb[0].mxu0
        %v1031 = vadd.f32 %v704, %v1030
        %v1032 = vpop.f32.mrb[0].mxu0
        %1033 = vmatprep.mubr.f32.mxu0 0.0
        %1034 = vmatmul.mubr.f32.gmra.mrb[0].mxu0 %v750
        %v1035 = vpop.f32.mrb[0].mxu0
        %v1036 = vadd.f32 %v704, %v1035
        %v1037 = vpop.f32.mrb[0].mxu0
        %1038 = vmatprep.mubr.f32.mxu0 0.0
        %1039 = vmatmul.mubr.f32.gmra.mrb[0].mxu0 %v753
        %v1040 = vpop.f32.mrb[0].mxu0
        %v1041 = vadd.f32 %v704, %v1040
        %v1042 = vpop.f32.mrb[0].mxu0
        %1043 = vmatprep.mubr.f32.mxu0 0.0
        %1044 = vmatmul.mubr.f32.gmra.mrb[0].mxu0 %v756
        %v1045 = vpop.f32.mrb[0].mxu0
        %v1046 = vadd.f32 %v704, %v1045
        %v1047 = vpop.f32.mrb[0].mxu0
        %1048 = vmatprep.mubr.f32.mxu0 0.0
        %1049 = vmatmul.mubr.f32.gmra.mrb[0].mxu0 %v759
        %v1050 = vpop.f32.mrb[0].mxu0
        %v1051 = vadd.f32 %v704, %v1050
        %v1052 = vpop.f32.mrb[0].mxu0
        %1053 = vmatprep.mubr.f32.mxu0 0.0
        %1054 = vmatmul.mubr.f32.gmra.mrb[0].mxu0 %v762
        %v1055 = vpop.f32.mrb[0].mxu0
        %v1056 = vadd.f32 %v704, %v1055
        %v1057 = vpop.f32.mrb[0].mxu0
        %1058 = vmatprep.mubr.f32.mxu0 0.0
        %1059 = vmatmul.mubr.f32.gmra.mrb[0].mxu0 %v765
        %v1060 = vpop.f32.mrb[0].mxu0
        %v1061 = vadd.f32 %v704, %v1060
        %v1062 = vpop.f32.mrb[0].mxu0
        %1063 = vmatprep.mubr.f32.mxu0 0.0
        %1064 = vmatmul.mubr.f32.gmra.mrb[0].mxu0 %v768
        %v1065 = vpop.f32.mrb[0].mxu0
        %v1066 = vadd.f32 %v704, %v1065
        %v1067 = vpop.f32.mrb[0].mxu0
        %1068 = vmatprep.mubr.f32.mxu0 0.0
        %1069 = vmatmul.mubr.f32.gmra.mrb[0].mxu0 %v771
        %v1070 = vpop.f32.mrb[0].mxu0
        %v1071 = vadd.f32 %v704, %v1070
        %v1072 = vpop.f32.mrb[0].mxu0
        %1073 = vmatprep.mubr.f32.mxu0 0.0
        %1074 = vmatmul.mubr.f32.gmra.mrb[0].mxu0 %v774
        %v1075 = vpop.f32.mrb[0].mxu0
        %v1076 = vadd.f32 %v704, %v1075
        %v1077 = vpop.f32.mrb[0].mxu0
        %1078 = vmatprep.mubr.f32.mxu0 0.0
        %1079 = vmatmul.mubr.f32.gmra.mrb[0].mxu0 %v777
        %v1080 = vpop.f32.mrb[0].mxu0
        %v1081 = vadd.f32 %v704, %v1080
        %v1082 = vpop.f32.mrb[0].mxu0
        %1083 = vmatprep.mubr.f32.mxu0 0.0
        %1084 = vmatmul.mubr.f32.gmra.mrb[0].mxu0 %v780
        %v1085 = vpop.f32.mrb[0].mxu0
        %v1086 = vadd.f32 %v704, %v1085
        %v1087 = vpop.f32.mrb[0].mxu0
        %1088 = vmatprep.mubr.f32.mxu0 0.0
        %1089 = vmatmul.mubr.f32.gmra.mrb[0].mxu0 %v783
        %v1090 = vpop.f32.mrb[0].mxu0
        %v1091 = vadd.f32 %v704, %v1090
        %v1092 = vpop.f32.mrb[0].mxu0
        %1093 = vmatprep.mubr.f32.mxu0 0.0
        %1094 = vmatmul.mubr.f32.gmra.mrb[0].mxu0 %v786
        %v1095 = vpop.f32.mrb[0].mxu0
        %v1096 = vadd.f32 %v704, %v1095
        %v1097 = vpop.f32.mrb[0].mxu0
        %1098 = vmatprep.mubr.f32.mxu0 0.0
        %1099 = vmatmul.mubr.f32.gmra.mrb[0].mxu0 %v789
        %v1100 = vpop.f32.mrb[0].mxu0
        %v1101 = vadd.f32 %v704, %v1100
        %v1102 = vpop.f32.mrb[0].mxu0
        %1103 = vmatprep.mubr.f32.mxu0 0.0
        %1104 = vmatmul.mubr.f32.gmra.mrb[0].mxu0 %v792
        %v1105 = vpop.f32.mrb[0].mxu0
        %v1106 = vadd.f32 %v704, %v1105
        %v1107 = vpop.f32.mrb[0].mxu0
        %1108 = vmatprep.mubr.f32.mxu0 0.0
        %1109 = vmatmul.mubr.f32.gmra.mrb[0].mxu0 %v795
        %v1110 = vpop.f32.mrb[0].mxu0
        %v1111 = vadd.f32 %v704, %v1110
        %v1112 = vpop.f32.mrb[0].mxu0
        %1113 = vmatprep.mubr.f32.mxu0 0.0
        %1114 = vmatmul.mubr.f32.gmra.mrb[0].mxu0 %v798
        %v1115 = vpop.f32.mrb[0].mxu0
        %v1116 = vadd.f32 %v704, %v1115
        %v1117 = vpop.f32.mrb[0].mxu0
        %1118 = vmatprep.mubr.f32.mxu0 0.0
        %1119 = vmatmul.mubr.f32.gmra.mrb[0].mxu0 %v801
        %v1120 = vpop.f32.mrb[0].mxu0
        %v1121 = vadd.f32 %v704, %v1120
        %v1122 = vpop.f32.mrb[0].mxu0
        %1123 = vmatprep.mubr.f32.mxu0 0.0
        %1124 = vmatmul.mubr.f32.gmra.mrb[0].mxu0 %v804
        %v1125 = vpop.f32.mrb[0].mxu0
        %v1126 = vadd.f32 %v704, %v1125
        %v1127 = vpop.f32.mrb[0].mxu0
        %1128 = vmatprep.mubr.f32.mxu0 0.0
        %1129 = vmatmul.mubr.f32.gmra.mrb[0].mxu0 %v807
        %v1130 = vpop.f32.mrb[0].mxu0
        %v1131 = vadd.f32 %v704, %v1130
        %v1132 = vpop.f32.mrb[0].mxu0
        %1133 = vmatprep.mubr.f32.mxu0 0.0
        %1134 = vmatmul.mubr.f32.gmra.mrb[0].mxu0 %v810
        %v1135 = vpop.f32.mrb[0].mxu0
        %v1136 = vadd.f32 %v704, %v1135
        %v1137 = vpop.f32.mrb[0].mxu0
        %1138 = vmatprep.mubr.f32.mxu0 0.0
        %1139 = vmatmul.mubr.f32.gmra.mrb[0].mxu0 %v813
        %v1140 = vpop.f32.mrb[0].mxu0
        %v1141 = vadd.f32 %v704, %v1140
        %v1142 = vpop.f32.mrb[0].mxu0
        %1143 = vmatprep.mubr.f32.mxu0 0.0
        %1144 = vmatmul.mubr.f32.gmra.mrb[0].mxu0 %v816
        %v1145 = vpop.f32.mrb[0].mxu0
        %v1146 = vadd.f32 %v704, %v1145
        %v1147 = vpop.f32.mrb[0].mxu0
        %1148 = vmatprep.mubr.f32.mxu0 0.0
        %1149 = vmatmul.mubr.f32.gmra.mrb[0].mxu0 %v819
        %v1150 = vpop.f32.mrb[0].mxu0
        %v1151 = vadd.f32 %v704, %v1150
        %v1152 = vpop.f32.mrb[0].mxu0
        %1153 = vmatprep.mubr.f32.mxu0 0.0
        %1154 = vmatmul.mubr.f32.gmra.mrb[0].mxu0 %v822
        %v1155 = vpop.f32.mrb[0].mxu0
        %v1156 = vadd.f32 %v704, %v1155
        %v1157 = vpop.f32.mrb[0].mxu0
        %1158 = vmatprep.mubr.f32.mxu0 0.0
        %1159 = vmatmul.mubr.f32.gmra.mrb[0].mxu0 %v825
        %v1160 = vpop.f32.mrb[0].mxu0
        %v1161 = vadd.f32 %v704, %v1160
        %v1162 = vpop.f32.mrb[0].mxu0
        %1163 = vmatprep.mubr.f32.mxu0 0.0
        %1164 = vmatmul.mubr.f32.gmra.mrb[0].mxu0 %v828
        %v1165 = vpop.f32.mrb[0].mxu0
        %v1166 = vadd.f32 %v704, %v1165
        %v1167 = vpop.f32.mrb[0].mxu0
        %1168 = vmatprep.mubr.f32.mxu0 0.0
        %1169 = vmatmul.mubr.f32.gmra.mrb[0].mxu0 %v831
        %v1170 = vpop.f32.mrb[0].mxu0
        %v1171 = vadd.f32 %v704, %v1170
        %v1172 = vpop.f32.mrb[0].mxu0
        %1173 = vmatprep.mubr.f32.mxu0 0.0
        %1174 = vmatmul.mubr.f32.gmra.mrb[0].mxu0 %v834
        %v1175 = vpop.f32.mrb[0].mxu0
        %v1176 = vadd.f32 %v704, %v1175
        %v1177 = vpop.f32.mrb[0].mxu0
        %1178 = vmatprep.mubr.f32.mxu0 0.0
        %1179 = vmatmul.mubr.f32.gmra.mrb[0].mxu0 %v837
        %v1180 = vpop.f32.mrb[0].mxu0
        %v1181 = vadd.f32 %v704, %v1180
        %v1182 = vpop.f32.mrb[0].mxu0
        %1183 = vmatprep.mubr.f32.mxu0 0.0
        %1184 = vmatmul.mubr.f32.gmra.mrb[0].mxu0 %v840
        %v1185 = vpop.f32.mrb[0].mxu0
        %v1186 = vadd.f32 %v704, %v1185
        %v1187 = vpop.f32.mrb[0].mxu0
        %1188 = vmatprep.mubr.f32.mxu0 0.0
        %1189 = vmatmul.mubr.f32.gmra.mrb[0].mxu0 %v843
        %v1190 = vpop.f32.mrb[0].mxu0
        %v1191 = vadd.f32 %v704, %v1190
        %v1192 = vpop.f32.mrb[0].mxu0
        %1193 = vmatprep.mubr.f32.mxu0 0.0
        %1194 = vmatmul.mubr.f32.gmra.mrb[0].mxu0 %v846
        %v1195 = vpop.f32.mrb[0].mxu0
        %v1196 = vadd.f32 %v704, %v1195
        %v1197 = vpop.f32.mrb[0].mxu0
        %1198 = vmatprep.mubr.f32.mxu0 0.0
        %1199 = vmatmul.mubr.f32.gmra.mrb[0].mxu0 %v849
        %v1200 = vpop.f32.mrb[0].mxu0
        %v1201 = vadd.f32 %v704, %v1200
        %v1202 = vpop.f32.mrb[0].mxu0
        %1203 = vmatprep.mubr.f32.mxu0 0.0
        %1204 = vmatmul.mubr.f32.gmra.mrb[0].mxu0 %v852
        %v1205 = vpop.f32.mrb[0].mxu0
        %v1206 = vadd.f32 %v704, %v1205
        %v1207 = vpop.f32.mrb[0].mxu0
        %1208 = vmatprep.mubr.f32.mxu0 0.0
        %1209 = vmatmul.mubr.f32.gmra.mrb[0].mxu0 %v855
        %v1210 = vpop.f32.mrb[0].mxu0
        %v1211 = vadd.f32 %v704, %v1210
        %v1212 = vpop.f32.mrb[0].mxu0
        %1213 = vmatprep.mubr.f32.mxu0 0.0
        %1214 = vmatmul.mubr.f32.gmra.mrb[0].mxu0 %v858
        %v1215 = vpop.f32.mrb[0].mxu0
        %v1216 = vadd.f32 %v704, %v1215
        %v1217 = vpop.f32.mrb[0].mxu0
        %1218 = vmatprep.mubr.f32.mxu0 0.0
        %1219 = vmatmul.mubr.f32.gmra.mrb[0].mxu0 %v861
        %v1220 = vpop.f32.mrb[0].mxu0
        %v1221 = vadd.f32 %v704, %v1220
        %v1222 = vpop.f32.mrb[0].mxu0
        %1223 = vmatprep.mubr.f32.mxu0 0.0
        %1224 = vmatmul.mubr.f32.gmra.mrb[0].mxu0 %v864
        %v1225 = vpop.f32.mrb[0].mxu0
        %v1226 = vadd.f32 %v704, %v1225
        %v1227 = vpop.f32.mrb[0].mxu0
        %1228 = vmatprep.mubr.f32.mxu0 0.0
        %1229 = vmatmul.mubr.f32.gmra.mrb[0].mxu0 %v867
        %v1230 = vpop.f32.mrb[0].mxu0
        %v1231 = vadd.f32 %v704, %v1230
        %v1232 = vpop.f32.mrb[0].mxu0
        %1233 = vmatprep.mubr.f32.mxu0 0.0
        %1234 = vmatmul.mubr.f32.gmra.mrb[0].mxu0 %v870
        %v1235 = vpop.f32.mrb[0].mxu0
        %v1236 = vadd.f32 %v704, %v1235
        %v1237 = vpop.f32.mrb[0].mxu0
        %1238 = vmatprep.mubr.f32.mxu0 0.0
        %1239 = vmatmul.mubr.f32.gmra.mrb[0].mxu0 %v873
        %v1240 = vpop.f32.mrb[0].mxu0
        %v1241 = vadd.f32 %v704, %v1240
        %v1242 = vpop.f32.mrb[0].mxu0
        %1243 = vmatprep.mubr.f32.mxu0 0.0
        %1244 = vmatmul.mubr.f32.gmra.mrb[0].mxu0 %v876
        %v1245 = vpop.f32.mrb[0].mxu0
        %v1246 = vadd.f32 %v704, %v1245
        %v1247 = vpop.f32.mrb[0].mxu0
        %1248 = vmatprep.mubr.f32.mxu0 0.0
        %1249 = vmatmul.mubr.f32.gmra.mrb[0].mxu0 %v879
        %v1250 = vpop.f32.mrb[0].mxu0
        %v1251 = vadd.f32 %v704, %v1250
        %v1252 = vpop.f32.mrb[0].mxu0
        %1253 = vmatprep.mubr.f32.mxu0 0.0
        %1254 = vmatmul.mubr.f32.gmra.mrb[0].mxu0 %v882
        %v1255 = vpop.f32.mrb[0].mxu0
        %v1256 = vadd.f32 %v704, %v1255
        %v1257 = vpop.f32.mrb[0].mxu0
        %1258 = vmatprep.mubr.f32.mxu0 0.0
        %1259 = vmatmul.mubr.f32.gmra.mrb[0].mxu0 %v885
        %v1260 = vpop.f32.mrb[0].mxu0
        %v1261 = vadd.f32 %v704, %v1260
        %v1262 = vpop.f32.mrb[0].mxu0
        %1263 = vmatprep.mubr.f32.mxu0 0.0
        %1264 = vmatmul.mubr.f32.gmra.mrb[0].mxu0 %v888
        %v1265 = vpop.f32.mrb[0].mxu0
        %v1266 = vadd.f32 %v704, %v1265
        %v1267 = vpop.f32.mrb[0].mxu0
        %1268 = vmatprep.mubr.f32.mxu0 0.0
        %1269 = vmatmul.mubr.f32.gmra.mrb[0].mxu0 %v891
        %v1270 = vpop.f32.mrb[0].mxu0
        %v1271 = vadd.f32 %v704, %v1270
        %v1272 = vpop.f32.mrb[0].mxu0
        %1273 = vmatprep.mubr.f32.mxu0 0.0
        %1274 = vmatmul.mubr.f32.gmra.mrb[0].mxu0 %v894
        %v1275 = vpop.f32.mrb[0].mxu0
        %v1276 = vadd.f32 %v704, %v1275
        %v1277 = vpop.f32.mrb[0].mxu0
        %1278 = vmatprep.mubr.f32.mxu0 0.0
        %1279 = vmatmul.mubr.f32.gmra.mrb[0].mxu0 %v897
        %v1280 = vpop.f32.mrb[0].mxu0
        %v1281 = vadd.f32 %v704, %v1280
        %v1282 = vpop.f32.mrb[0].mxu0
        %1283 = vdwg.mxu0
        %v1284 = vld [vmem:[%s6] sm:$0xff]
        %v1285 = vld [vmem:[%s6 + $0x8] sm:$0xf]
        %v1286 = vld [vmem:[%s7] sm:$0x1]
        %v1288 = vlaneseq
        %v1289 = vshrl.u32 %v1288, 7
        %v1290 = vsub.s32 0, %v1289
        %v1291 = vrot.slane %v1286, %v1290
        %vm1293 = vcmask 97280
        %v1295 = vsel %vm1293, %v569, 0
        %v1298 = vsel %vm1293, %v570, 0
        %v1301 = vsel %vm1293, %v571, 0
        %v1304 = vsel %vm1293, %v572, 0
        %v1307 = vsel %vm1293, %v573, 0
        %v1310 = vsel %vm1293, %v574, 0
        %v1313 = vsel %vm1293, %v575, 0
        %v1316 = vsel %vm1293, %v576, 0
        %v1319 = vsel %vm1293, %v577, 0
        %v1322 = vsel %vm1293, %v578, 0
        %v1325 = vsel %vm1293, %v579, 0
        %v1328 = vsel %vm1293, %v580, 0
        %v1331 = vsel %vm1293, %v581, 0
        %v1334 = vsel %vm1293, %v582, 0
        %v1337 = vsel %vm1293, %v583, 0
        %v1340 = vsel %vm1293, %v584, 0
        %v1343 = vsel %vm1293, %v585, 0
        %v1346 = vsel %vm1293, %v586, 0
        %v1349 = vsel %vm1293, %v587, 0
        %v1352 = vsel %vm1293, %v588, 0
        %v1355 = vsel %vm1293, %v589, 0
        %v1358 = vsel %vm1293, %v590, 0
        %v1361 = vsel %vm1293, %v591, 0
        %v1364 = vsel %vm1293, %v592, 0
        %v1367 = vsel %vm1293, %v593, 0
        %v1370 = vsel %vm1293, %v594, 0
        %v1373 = vsel %vm1293, %v595, 0
        %v1376 = vsel %vm1293, %v596, 0
        %v1379 = vsel %vm1293, %v597, 0
        %v1382 = vsel %vm1293, %v598, 0
        %v1385 = vsel %vm1293, %v599, 0
        %v1388 = vsel %vm1293, %v600, 0
        %v1391 = vsel %vm1293, %v601, 0
        %v1394 = vsel %vm1293, %v602, 0
        %v1397 = vsel %vm1293, %v603, 0
        %v1400 = vsel %vm1293, %v604, 0
        %v1403 = vsel %vm1293, %v605, 0
        %v1406 = vsel %vm1293, %v606, 0
        %v1409 = vsel %vm1293, %v607, 0
        %v1412 = vsel %vm1293, %v608, 0
        %v1415 = vsel %vm1293, %v609, 0
        %v1418 = vsel %vm1293, %v610, 0
        %v1421 = vsel %vm1293, %v611, 0
        %v1424 = vsel %vm1293, %v612, 0
        %v1427 = vsel %vm1293, %v613, 0
        %v1430 = vsel %vm1293, %v614, 0
        %v1433 = vsel %vm1293, %v615, 0
        %v1436 = vsel %vm1293, %v616, 0
        %v1439 = vsel %vm1293, %v617, 0
        %v1442 = vsel %vm1293, %v618, 0
        %v1445 = vsel %vm1293, %v619, 0
        %v1448 = vsel %vm1293, %v620, 0
        %v1451 = vsel %vm1293, %v621, 0
        %v1454 = vsel %vm1293, %v622, 0
        %v1457 = vsel %vm1293, %v623, 0
        %v1460 = vsel %vm1293, %v624, 0
        %v1463 = vsel %vm1293, %v625, 0
        %v1466 = vsel %vm1293, %v626, 0
        %v1469 = vsel %vm1293, %v627, 0
        %v1472 = vsel %vm1293, %v628, 0
        %v1475 = vsel %vm1293, %v629, 0
        %v1478 = vsel %vm1293, %v630, 0
        %v1481 = vsel %vm1293, %v631, 0
        %v1484 = vsel %vm1293, %v632, 0
        %vm1486 = vcmask 1043456
        %v1488 = vsel %vm1486, %v1285, 0
        %1490 = vmatprep.subr.mxu0 0.0
        %1491 = vmatpush1.msra.mxu0 %v1284
        %1492 = vmatprep.subr.mxu0 0.0
        %1493 = vmatpush1.msra.mxu0 %v1488
        %1494 = vmatprep.subr.mxu0 0.0
        %1495 = vmatpush1.msra.mxu0 0.0
        %1496 = vmatprep.subr.mxu0 0.0
        %1497 = vmatpush1.msra.mxu0 0.0
        %1498 = vmatprep.subr.mxu0 0.0
        %1499 = vmatpush1.msra.mxu0 0.0
        %1500 = vmatprep.subr.mxu0 0.0
        %1501 = vmatpush1.msra.mxu0 0.0
        %1502 = vmatprep.subr.mxu0 0.0
        %1503 = vmatpush1.msra.mxu0 0.0
        %1504 = vmatprep.subr.mxu0 0.0
        %1505 = vmatpush1.msra.mxu0 0.0
        %1506 = vmatprep.subr.mxu0 0.0
        %1507 = vmatpush1.msra.mxu0 0.0
        %1508 = vmatprep.subr.mxu0 0.0
        %1509 = vmatpush1.msra.mxu0 0.0
        %1510 = vmatprep.subr.mxu0 0.0
        %1511 = vmatpush1.msra.mxu0 0.0
        %1512 = vmatprep.subr.mxu0 0.0
        %1513 = vmatpush1.msra.mxu0 0.0
        %1514 = vmatprep.subr.mxu0 0.0
        %1515 = vmatpush1.msra.mxu0 0.0
        %1516 = vmatprep.subr.mxu0 0.0
        %1517 = vmatpush1.msra.mxu0 0.0
        %1518 = vmatprep.subr.mxu0 0.0
        %1519 = vmatpush1.msra.mxu0 0.0
        %1520 = vmatprep.subr.mxu0 0.0
        %1521 = vmatpush1.msra.mxu0 0.0
        %1522 = vmatprep.subr.mxu0 0.0
        %1523 = vmatpush1.msra.mxu0 0.0
        %1524 = vmatprep.subr.mxu0 0.0
        %1525 = vmatpush1.msra.mxu0 0.0
        %1526 = vmatprep.subr.mxu0 0.0
        %1527 = vmatpush1.msra.mxu0 0.0
        %1528 = vmatprep.subr.mxu0 0.0
        %1529 = vmatpush1.msra.mxu0 0.0
        %1530 = vmatprep.subr.mxu0 0.0
        %1531 = vmatpush1.msra.mxu0 0.0
        %1532 = vmatprep.subr.mxu0 0.0
        %1533 = vmatpush1.msra.mxu0 0.0
        %1534 = vmatprep.subr.mxu0 0.0
        %1535 = vmatpush1.msra.mxu0 0.0
        %1536 = vmatprep.subr.mxu0 0.0
        %1537 = vmatpush1.msra.mxu0 0.0
        %1538 = vmatprep.subr.mxu0 0.0
        %1539 = vmatpush1.msra.mxu0 0.0
        %1540 = vmatprep.subr.mxu0 0.0
        %1541 = vmatpush1.msra.mxu0 0.0
        %1542 = vmatprep.subr.mxu0 0.0
        %1543 = vmatpush1.msra.mxu0 0.0
        %1544 = vmatprep.subr.mxu0 0.0
        %1545 = vmatpush1.msra.mxu0 0.0
        %1546 = vmatprep.subr.mxu0 0.0
        %1547 = vmatpush1.msra.mxu0 0.0
        %1548 = vmatprep.subr.mxu0 0.0
        %1549 = vmatpush1.msra.mxu0 0.0
        %1550 = vmatprep.subr.mxu0 0.0
        %1551 = vmatpush1.msra.mxu0 0.0
        %1552 = vmatprep.subr.mxu0 0.0
        %1553 = vmatpush1.msra.mxu0 0.0
        %1554 = vmatprep.mubr.f32.mxu0 0.0
        %1555 = vmatmul.mubr.f32.gmra.mrb[0].mxu0 %v1295
        %v1556 = vpop.f32.mrb[0].mxu0
        %v1557 = vadd.f32 %v1291, %v1556
        %v1558 = vpop.f32.mrb[0].mxu0
        %1559 = vmatprep.mubr.f32.mxu0 0.0
        %1560 = vmatmul.mubr.f32.gmra.mrb[0].mxu0 %v1298
        %v1561 = vpop.f32.mrb[0].mxu0
        %v1562 = vadd.f32 %v1291, %v1561
        %v1563 = vpop.f32.mrb[0].mxu0
        %1564 = vmatprep.mubr.f32.mxu0 0.0
        %1565 = vmatmul.mubr.f32.gmra.mrb[0].mxu0 %v1301
        %v1566 = vpop.f32.mrb[0].mxu0
        %v1567 = vadd.f32 %v1291, %v1566
        %v1568 = vpop.f32.mrb[0].mxu0
        %1569 = vmatprep.mubr.f32.mxu0 0.0
        %1570 = vmatmul.mubr.f32.gmra.mrb[0].mxu0 %v1304
        %v1571 = vpop.f32.mrb[0].mxu0
        %v1572 = vadd.f32 %v1291, %v1571
        %v1573 = vpop.f32.mrb[0].mxu0
        %1574 = vmatprep.mubr.f32.mxu0 0.0
        %1575 = vmatmul.mubr.f32.gmra.mrb[0].mxu0 %v1307
        %v1576 = vpop.f32.mrb[0].mxu0
        %v1577 = vadd.f32 %v1291, %v1576
        %v1578 = vpop.f32.mrb[0].mxu0
        %1579 = vmatprep.mubr.f32.mxu0 0.0
        %1580 = vmatmul.mubr.f32.gmra.mrb[0].mxu0 %v1310
        %v1581 = vpop.f32.mrb[0].mxu0
        %v1582 = vadd.f32 %v1291, %v1581
        %v1583 = vpop.f32.mrb[0].mxu0
        %1584 = vmatprep.mubr.f32.mxu0 0.0
        %1585 = vmatmul.mubr.f32.gmra.mrb[0].mxu0 %v1313
        %v1586 = vpop.f32.mrb[0].mxu0
        %v1587 = vadd.f32 %v1291, %v1586
        %v1588 = vpop.f32.mrb[0].mxu0
        %1589 = vmatprep.mubr.f32.mxu0 0.0
        %1590 = vmatmul.mubr.f32.gmra.mrb[0].mxu0 %v1316
        %v1591 = vpop.f32.mrb[0].mxu0
        %v1592 = vadd.f32 %v1291, %v1591
        %v1593 = vpop.f32.mrb[0].mxu0
        %1594 = vmatprep.mubr.f32.mxu0 0.0
        %1595 = vmatmul.mubr.f32.gmra.mrb[0].mxu0 %v1319
        %v1596 = vpop.f32.mrb[0].mxu0
        %v1597 = vadd.f32 %v1291, %v1596
        %v1598 = vpop.f32.mrb[0].mxu0
        %1599 = vmatprep.mubr.f32.mxu0 0.0
        %1600 = vmatmul.mubr.f32.gmra.mrb[0].mxu0 %v1322
        %v1601 = vpop.f32.mrb[0].mxu0
        %v1602 = vadd.f32 %v1291, %v1601
        %v1603 = vpop.f32.mrb[0].mxu0
        %1604 = vmatprep.mubr.f32.mxu0 0.0
        %1605 = vmatmul.mubr.f32.gmra.mrb[0].mxu0 %v1325
        %v1606 = vpop.f32.mrb[0].mxu0
        %v1607 = vadd.f32 %v1291, %v1606
        %v1608 = vpop.f32.mrb[0].mxu0
        %1609 = vmatprep.mubr.f32.mxu0 0.0
        %1610 = vmatmul.mubr.f32.gmra.mrb[0].mxu0 %v1328
        %v1611 = vpop.f32.mrb[0].mxu0
        %v1612 = vadd.f32 %v1291, %v1611
        %v1613 = vpop.f32.mrb[0].mxu0
        %1614 = vmatprep.mubr.f32.mxu0 0.0
        %1615 = vmatmul.mubr.f32.gmra.mrb[0].mxu0 %v1331
        %v1616 = vpop.f32.mrb[0].mxu0
        %v1617 = vadd.f32 %v1291, %v1616
        %v1618 = vpop.f32.mrb[0].mxu0
        %1619 = vmatprep.mubr.f32.mxu0 0.0
        %1620 = vmatmul.mubr.f32.gmra.mrb[0].mxu0 %v1334
        %v1621 = vpop.f32.mrb[0].mxu0
        %v1622 = vadd.f32 %v1291, %v1621
        %v1623 = vpop.f32.mrb[0].mxu0
        %1624 = vmatprep.mubr.f32.mxu0 0.0
        %1625 = vmatmul.mubr.f32.gmra.mrb[0].mxu0 %v1337
        %v1626 = vpop.f32.mrb[0].mxu0
        %v1627 = vadd.f32 %v1291, %v1626
        %v1628 = vpop.f32.mrb[0].mxu0
        %1629 = vmatprep.mubr.f32.mxu0 0.0
        %1630 = vmatmul.mubr.f32.gmra.mrb[0].mxu0 %v1340
        %v1631 = vpop.f32.mrb[0].mxu0
        %v1632 = vadd.f32 %v1291, %v1631
        %v1633 = vpop.f32.mrb[0].mxu0
        %1634 = vmatprep.mubr.f32.mxu0 0.0
        %1635 = vmatmul.mubr.f32.gmra.mrb[0].mxu0 %v1343
        %v1636 = vpop.f32.mrb[0].mxu0
        %v1637 = vadd.f32 %v1291, %v1636
        %v1638 = vpop.f32.mrb[0].mxu0
        %1639 = vmatprep.mubr.f32.mxu0 0.0
        %1640 = vmatmul.mubr.f32.gmra.mrb[0].mxu0 %v1346
        %v1641 = vpop.f32.mrb[0].mxu0
        %v1642 = vadd.f32 %v1291, %v1641
        %v1643 = vpop.f32.mrb[0].mxu0
        %1644 = vmatprep.mubr.f32.mxu0 0.0
        %1645 = vmatmul.mubr.f32.gmra.mrb[0].mxu0 %v1349
        %v1646 = vpop.f32.mrb[0].mxu0
        %v1647 = vadd.f32 %v1291, %v1646
        %v1648 = vpop.f32.mrb[0].mxu0
        %1649 = vmatprep.mubr.f32.mxu0 0.0
        %1650 = vmatmul.mubr.f32.gmra.mrb[0].mxu0 %v1352
        %v1651 = vpop.f32.mrb[0].mxu0
        %v1652 = vadd.f32 %v1291, %v1651
        %v1653 = vpop.f32.mrb[0].mxu0
        %1654 = vmatprep.mubr.f32.mxu0 0.0
        %1655 = vmatmul.mubr.f32.gmra.mrb[0].mxu0 %v1355
        %v1656 = vpop.f32.mrb[0].mxu0
        %v1657 = vadd.f32 %v1291, %v1656
        %v1658 = vpop.f32.mrb[0].mxu0
        %1659 = vmatprep.mubr.f32.mxu0 0.0
        %1660 = vmatmul.mubr.f32.gmra.mrb[0].mxu0 %v1358
        %v1661 = vpop.f32.mrb[0].mxu0
        %v1662 = vadd.f32 %v1291, %v1661
        %v1663 = vpop.f32.mrb[0].mxu0
        %1664 = vmatprep.mubr.f32.mxu0 0.0
        %1665 = vmatmul.mubr.f32.gmra.mrb[0].mxu0 %v1361
        %v1666 = vpop.f32.mrb[0].mxu0
        %v1667 = vadd.f32 %v1291, %v1666
        %v1668 = vpop.f32.mrb[0].mxu0
        %1669 = vmatprep.mubr.f32.mxu0 0.0
        %1670 = vmatmul.mubr.f32.gmra.mrb[0].mxu0 %v1364
        %v1671 = vpop.f32.mrb[0].mxu0
        %v1672 = vadd.f32 %v1291, %v1671
        %v1673 = vpop.f32.mrb[0].mxu0
        %1674 = vmatprep.mubr.f32.mxu0 0.0
        %1675 = vmatmul.mubr.f32.gmra.mrb[0].mxu0 %v1367
        %v1676 = vpop.f32.mrb[0].mxu0
        %v1677 = vadd.f32 %v1291, %v1676
        %v1678 = vpop.f32.mrb[0].mxu0
        %1679 = vmatprep.mubr.f32.mxu0 0.0
        %1680 = vmatmul.mubr.f32.gmra.mrb[0].mxu0 %v1370
        %v1681 = vpop.f32.mrb[0].mxu0
        %v1682 = vadd.f32 %v1291, %v1681
        %v1683 = vpop.f32.mrb[0].mxu0
        %1684 = vmatprep.mubr.f32.mxu0 0.0
        %1685 = vmatmul.mubr.f32.gmra.mrb[0].mxu0 %v1373
        %v1686 = vpop.f32.mrb[0].mxu0
        %v1687 = vadd.f32 %v1291, %v1686
        %v1688 = vpop.f32.mrb[0].mxu0
        %1689 = vmatprep.mubr.f32.mxu0 0.0
        %1690 = vmatmul.mubr.f32.gmra.mrb[0].mxu0 %v1376
        %v1691 = vpop.f32.mrb[0].mxu0
        %v1692 = vadd.f32 %v1291, %v1691
        %v1693 = vpop.f32.mrb[0].mxu0
        %1694 = vmatprep.mubr.f32.mxu0 0.0
        %1695 = vmatmul.mubr.f32.gmra.mrb[0].mxu0 %v1379
        %v1696 = vpop.f32.mrb[0].mxu0
        %v1697 = vadd.f32 %v1291, %v1696
        %v1698 = vpop.f32.mrb[0].mxu0
        %1699 = vmatprep.mubr.f32.mxu0 0.0
        %1700 = vmatmul.mubr.f32.gmra.mrb[0].mxu0 %v1382
        %v1701 = vpop.f32.mrb[0].mxu0
        %v1702 = vadd.f32 %v1291, %v1701
        %v1703 = vpop.f32.mrb[0].mxu0
        %1704 = vmatprep.mubr.f32.mxu0 0.0
        %1705 = vmatmul.mubr.f32.gmra.mrb[0].mxu0 %v1385
        %v1706 = vpop.f32.mrb[0].mxu0
        %v1707 = vadd.f32 %v1291, %v1706
        %v1708 = vpop.f32.mrb[0].mxu0
        %1709 = vmatprep.mubr.f32.mxu0 0.0
        %1710 = vmatmul.mubr.f32.gmra.mrb[0].mxu0 %v1388
        %v1711 = vpop.f32.mrb[0].mxu0
        %v1712 = vadd.f32 %v1291, %v1711
        %v1713 = vpop.f32.mrb[0].mxu0
        %1714 = vmatprep.mubr.f32.mxu0 0.0
        %1715 = vmatmul.mubr.f32.gmra.mrb[0].mxu0 %v1391
        %v1716 = vpop.f32.mrb[0].mxu0
        %v1717 = vadd.f32 %v1291, %v1716
        %v1718 = vpop.f32.mrb[0].mxu0
        %1719 = vmatprep.mubr.f32.mxu0 0.0
        %1720 = vmatmul.mubr.f32.gmra.mrb[0].mxu0 %v1394
        %v1721 = vpop.f32.mrb[0].mxu0
        %v1722 = vadd.f32 %v1291, %v1721
        %v1723 = vpop.f32.mrb[0].mxu0
        %1724 = vmatprep.mubr.f32.mxu0 0.0
        %1725 = vmatmul.mubr.f32.gmra.mrb[0].mxu0 %v1397
        %v1726 = vpop.f32.mrb[0].mxu0
        %v1727 = vadd.f32 %v1291, %v1726
        %v1728 = vpop.f32.mrb[0].mxu0
        %1729 = vmatprep.mubr.f32.mxu0 0.0
        %1730 = vmatmul.mubr.f32.gmra.mrb[0].mxu0 %v1400
        %v1731 = vpop.f32.mrb[0].mxu0
        %v1732 = vadd.f32 %v1291, %v1731
        %v1733 = vpop.f32.mrb[0].mxu0
        %1734 = vmatprep.mubr.f32.mxu0 0.0
        %1735 = vmatmul.mubr.f32.gmra.mrb[0].mxu0 %v1403
        %v1736 = vpop.f32.mrb[0].mxu0
        %v1737 = vadd.f32 %v1291, %v1736
        %v1738 = vpop.f32.mrb[0].mxu0
        %1739 = vmatprep.mubr.f32.mxu0 0.0
        %1740 = vmatmul.mubr.f32.gmra.mrb[0].mxu0 %v1406
        %v1741 = vpop.f32.mrb[0].mxu0
        %v1742 = vadd.f32 %v1291, %v1741
        %v1743 = vpop.f32.mrb[0].mxu0
        %1744 = vmatprep.mubr.f32.mxu0 0.0
        %1745 = vmatmul.mubr.f32.gmra.mrb[0].mxu0 %v1409
        %v1746 = vpop.f32.mrb[0].mxu0
        %v1747 = vadd.f32 %v1291, %v1746
        %v1748 = vpop.f32.mrb[0].mxu0
        %1749 = vmatprep.mubr.f32.mxu0 0.0
        %1750 = vmatmul.mubr.f32.gmra.mrb[0].mxu0 %v1412
        %v1751 = vpop.f32.mrb[0].mxu0
        %v1752 = vadd.f32 %v1291, %v1751
        %v1753 = vpop.f32.mrb[0].mxu0
        %1754 = vmatprep.mubr.f32.mxu0 0.0
        %1755 = vmatmul.mubr.f32.gmra.mrb[0].mxu0 %v1415
        %v1756 = vpop.f32.mrb[0].mxu0
        %v1757 = vadd.f32 %v1291, %v1756
        %v1758 = vpop.f32.mrb[0].mxu0
        %1759 = vmatprep.mubr.f32.mxu0 0.0
        %1760 = vmatmul.mubr.f32.gmra.mrb[0].mxu0 %v1418
        %v1761 = vpop.f32.mrb[0].mxu0
        %v1762 = vadd.f32 %v1291, %v1761
        %v1763 = vpop.f32.mrb[0].mxu0
        %1764 = vmatprep.mubr.f32.mxu0 0.0
        %1765 = vmatmul.mubr.f32.gmra.mrb[0].mxu0 %v1421
        %v1766 = vpop.f32.mrb[0].mxu0
        %v1767 = vadd.f32 %v1291, %v1766
        %v1768 = vpop.f32.mrb[0].mxu0
        %1769 = vmatprep.mubr.f32.mxu0 0.0
        %1770 = vmatmul.mubr.f32.gmra.mrb[0].mxu0 %v1424
        %v1771 = vpop.f32.mrb[0].mxu0
        %v1772 = vadd.f32 %v1291, %v1771
        %v1773 = vpop.f32.mrb[0].mxu0
        %1774 = vmatprep.mubr.f32.mxu0 0.0
        %1775 = vmatmul.mubr.f32.gmra.mrb[0].mxu0 %v1427
        %v1776 = vpop.f32.mrb[0].mxu0
        %v1777 = vadd.f32 %v1291, %v1776
        %v1778 = vpop.f32.mrb[0].mxu0
        %1779 = vmatprep.mubr.f32.mxu0 0.0
        %1780 = vmatmul.mubr.f32.gmra.mrb[0].mxu0 %v1430
        %v1781 = vpop.f32.mrb[0].mxu0
        %v1782 = vadd.f32 %v1291, %v1781
        %v1783 = vpop.f32.mrb[0].mxu0
        %1784 = vmatprep.mubr.f32.mxu0 0.0
        %1785 = vmatmul.mubr.f32.gmra.mrb[0].mxu0 %v1433
        %v1786 = vpop.f32.mrb[0].mxu0
        %v1787 = vadd.f32 %v1291, %v1786
        %v1788 = vpop.f32.mrb[0].mxu0
        %1789 = vmatprep.mubr.f32.mxu0 0.0
        %1790 = vmatmul.mubr.f32.gmra.mrb[0].mxu0 %v1436
        %v1791 = vpop.f32.mrb[0].mxu0
        %v1792 = vadd.f32 %v1291, %v1791
        %v1793 = vpop.f32.mrb[0].mxu0
        %1794 = vmatprep.mubr.f32.mxu0 0.0
        %1795 = vmatmul.mubr.f32.gmra.mrb[0].mxu0 %v1439
        %v1796 = vpop.f32.mrb[0].mxu0
        %v1797 = vadd.f32 %v1291, %v1796
        %v1798 = vpop.f32.mrb[0].mxu0
        %1799 = vmatprep.mubr.f32.mxu0 0.0
        %1800 = vmatmul.mubr.f32.gmra.mrb[0].mxu0 %v1442
        %v1801 = vpop.f32.mrb[0].mxu0
        %v1802 = vadd.f32 %v1291, %v1801
        %v1803 = vpop.f32.mrb[0].mxu0
        %1804 = vmatprep.mubr.f32.mxu0 0.0
        %1805 = vmatmul.mubr.f32.gmra.mrb[0].mxu0 %v1445
        %v1806 = vpop.f32.mrb[0].mxu0
        %v1807 = vadd.f32 %v1291, %v1806
        %v1808 = vpop.f32.mrb[0].mxu0
        %1809 = vmatprep.mubr.f32.mxu0 0.0
        %1810 = vmatmul.mubr.f32.gmra.mrb[0].mxu0 %v1448
        %v1811 = vpop.f32.mrb[0].mxu0
        %v1812 = vadd.f32 %v1291, %v1811
        %v1813 = vpop.f32.mrb[0].mxu0
        %1814 = vmatprep.mubr.f32.mxu0 0.0
        %1815 = vmatmul.mubr.f32.gmra.mrb[0].mxu0 %v1451
        %v1816 = vpop.f32.mrb[0].mxu0
        %v1817 = vadd.f32 %v1291, %v1816
        %v1818 = vpop.f32.mrb[0].mxu0
        %1819 = vmatprep.mubr.f32.mxu0 0.0
        %1820 = vmatmul.mubr.f32.gmra.mrb[0].mxu0 %v1454
        %v1821 = vpop.f32.mrb[0].mxu0
        %v1822 = vadd.f32 %v1291, %v1821
        %v1823 = vpop.f32.mrb[0].mxu0
        %1824 = vmatprep.mubr.f32.mxu0 0.0
        %1825 = vmatmul.mubr.f32.gmra.mrb[0].mxu0 %v1457
        %v1826 = vpop.f32.mrb[0].mxu0
        %v1827 = vadd.f32 %v1291, %v1826
        %v1828 = vpop.f32.mrb[0].mxu0
        %1829 = vmatprep.mubr.f32.mxu0 0.0
        %1830 = vmatmul.mubr.f32.gmra.mrb[0].mxu0 %v1460
        %v1831 = vpop.f32.mrb[0].mxu0
        %v1832 = vadd.f32 %v1291, %v1831
        %v1833 = vpop.f32.mrb[0].mxu0
        %1834 = vmatprep.mubr.f32.mxu0 0.0
        %1835 = vmatmul.mubr.f32.gmra.mrb[0].mxu0 %v1463
        %v1836 = vpop.f32.mrb[0].mxu0
        %v1837 = vadd.f32 %v1291, %v1836
        %v1838 = vpop.f32.mrb[0].mxu0
        %1839 = vmatprep.mubr.f32.mxu0 0.0
        %1840 = vmatmul.mubr.f32.gmra.mrb[0].mxu0 %v1466
        %v1841 = vpop.f32.mrb[0].mxu0
        %v1842 = vadd.f32 %v1291, %v1841
        %v1843 = vpop.f32.mrb[0].mxu0
        %1844 = vmatprep.mubr.f32.mxu0 0.0
        %1845 = vmatmul.mubr.f32.gmra.mrb[0].mxu0 %v1469
        %v1846 = vpop.f32.mrb[0].mxu0
        %v1847 = vadd.f32 %v1291, %v1846
        %v1848 = vpop.f32.mrb[0].mxu0
        %1849 = vmatprep.mubr.f32.mxu0 0.0
        %1850 = vmatmul.mubr.f32.gmra.mrb[0].mxu0 %v1472
        %v1851 = vpop.f32.mrb[0].mxu0
        %v1852 = vadd.f32 %v1291, %v1851
        %v1853 = vpop.f32.mrb[0].mxu0
        %1854 = vmatprep.mubr.f32.mxu0 0.0
        %1855 = vmatmul.mubr.f32.gmra.mrb[0].mxu0 %v1475
        %v1856 = vpop.f32.mrb[0].mxu0
        %v1857 = vadd.f32 %v1291, %v1856
        %v1858 = vpop.f32.mrb[0].mxu0
        %1859 = vmatprep.mubr.f32.mxu0 0.0
        %1860 = vmatmul.mubr.f32.gmra.mrb[0].mxu0 %v1478
        %v1861 = vpop.f32.mrb[0].mxu0
        %v1862 = vadd.f32 %v1291, %v1861
        %v1863 = vpop.f32.mrb[0].mxu0
        %1864 = vmatprep.mubr.f32.mxu0 0.0
        %1865 = vmatmul.mubr.f32.gmra.mrb[0].mxu0 %v1481
        %v1866 = vpop.f32.mrb[0].mxu0
        %v1867 = vadd.f32 %v1291, %v1866
        %v1868 = vpop.f32.mrb[0].mxu0
        %1869 = vmatprep.mubr.f32.mxu0 0.0
        %1870 = vmatmul.mubr.f32.gmra.mrb[0].mxu0 %v1484
        %v1871 = vpop.f32.mrb[0].mxu0
        %v1872 = vadd.f32 %v1291, %v1871
        %v1873 = vpop.f32.mrb[0].mxu0
        %1874 = vdwg.mxu0
        %v1875 = vmax.f32 %v1557, 0.0
        %v1876 = vmax.f32 %v1562, 0.0
        %v1877 = vmax.f32 %v1567, 0.0
        %v1878 = vmax.f32 %v1572, 0.0
        %v1879 = vmax.f32 %v1577, 0.0
        %v1880 = vmax.f32 %v1582, 0.0
        %v1881 = vmax.f32 %v1587, 0.0
        %v1882 = vmax.f32 %v1592, 0.0
        %v1883 = vmax.f32 %v1597, 0.0
        %v1884 = vmax.f32 %v1602, 0.0
        %v1885 = vmax.f32 %v1607, 0.0
        %v1886 = vmax.f32 %v1612, 0.0
        %v1887 = vmax.f32 %v1617, 0.0
        %v1888 = vmax.f32 %v1622, 0.0
        %v1889 = vmax.f32 %v1627, 0.0
        %v1890 = vmax.f32 %v1632, 0.0
        %v1891 = vmax.f32 %v1637, 0.0
        %v1892 = vmax.f32 %v1642, 0.0
        %v1893 = vmax.f32 %v1647, 0.0
        %v1894 = vmax.f32 %v1652, 0.0
        %v1895 = vmax.f32 %v1657, 0.0
        %v1896 = vmax.f32 %v1662, 0.0
        %v1897 = vmax.f32 %v1667, 0.0
        %v1898 = vmax.f32 %v1672, 0.0
        %v1899 = vmax.f32 %v1677, 0.0
        %v1900 = vmax.f32 %v1682, 0.0
        %v1901 = vmax.f32 %v1687, 0.0
        %v1902 = vmax.f32 %v1692, 0.0
        %v1903 = vmax.f32 %v1697, 0.0
        %v1904 = vmax.f32 %v1702, 0.0
        %v1905 = vmax.f32 %v1707, 0.0
        %v1906 = vmax.f32 %v1712, 0.0
        %v1907 = vmax.f32 %v1717, 0.0
        %v1908 = vmax.f32 %v1722, 0.0
        %v1909 = vmax.f32 %v1727, 0.0
        %v1910 = vmax.f32 %v1732, 0.0
        %v1911 = vmax.f32 %v1737, 0.0
        %v1912 = vmax.f32 %v1742, 0.0
        %v1913 = vmax.f32 %v1747, 0.0
        %v1914 = vmax.f32 %v1752, 0.0
        %v1915 = vmax.f32 %v1757, 0.0
        %v1916 = vmax.f32 %v1762, 0.0
        %v1917 = vmax.f32 %v1767, 0.0
        %v1918 = vmax.f32 %v1772, 0.0
        %v1919 = vmax.f32 %v1777, 0.0
        %v1920 = vmax.f32 %v1782, 0.0
        %v1921 = vmax.f32 %v1787, 0.0
        %v1922 = vmax.f32 %v1792, 0.0
        %v1923 = vmax.f32 %v1797, 0.0
        %v1924 = vmax.f32 %v1802, 0.0
        %v1925 = vmax.f32 %v1807, 0.0
        %v1926 = vmax.f32 %v1812, 0.0
        %v1927 = vmax.f32 %v1817, 0.0
        %v1928 = vmax.f32 %v1822, 0.0
        %v1929 = vmax.f32 %v1827, 0.0
        %v1930 = vmax.f32 %v1832, 0.0
        %v1931 = vmax.f32 %v1837, 0.0
        %v1932 = vmax.f32 %v1842, 0.0
        %v1933 = vmax.f32 %v1847, 0.0
        %v1934 = vmax.f32 %v1852, 0.0
        %v1935 = vmax.f32 %v1857, 0.0
        %v1936 = vmax.f32 %v1862, 0.0
        %v1937 = vmax.f32 %v1867, 0.0
        %v1938 = vmax.f32 %v1872, 0.0
        %v1939 = vld [vmem:[%s8] sm:$0xff]
        %v1940 = vld [vmem:[%s8 + $0x8] sm:$0xff]
        %v1941 = vld [vmem:[%s8 + $0x10] sm:$0xff]
        %v1942 = vld [vmem:[%s8 + $0x18] sm:$0xff]
        %v1943 = vld [vmem:[%s8 + $0x20] sm:$0xff]
        %v1944 = vld [vmem:[%s8 + $0x28] sm:$0xff]
        %v1945 = vld [vmem:[%s8 + $0x30] sm:$0xff]
        %v1946 = vld [vmem:[%s8 + $0x38] sm:$0xff]
        %v1947 = vld [vmem:[%s9] sm:$0x1]
        %v1949 = vlaneseq
        %v1950 = vshrl.u32 %v1949, 7
        %v1951 = vsub.s32 0, %v1950
        %v1952 = vrot.slane %v1947, %v1951
        %vm1954 = vcmask 523264
        %v1956 = vsel %vm1954, %v1875, 0
        %v1959 = vsel %vm1954, %v1876, 0
        %v1962 = vsel %vm1954, %v1877, 0
        %v1965 = vsel %vm1954, %v1878, 0
        %v1968 = vsel %vm1954, %v1879, 0
        %v1971 = vsel %vm1954, %v1880, 0
        %v1974 = vsel %vm1954, %v1881, 0
        %v1977 = vsel %vm1954, %v1882, 0
        %v1980 = vsel %vm1954, %v1883, 0
        %v1983 = vsel %vm1954, %v1884, 0
        %v1986 = vsel %vm1954, %v1885, 0
        %v1989 = vsel %vm1954, %v1886, 0
        %v1992 = vsel %vm1954, %v1887, 0
        %v1995 = vsel %vm1954, %v1888, 0
        %v1998 = vsel %vm1954, %v1889, 0
        %v2001 = vsel %vm1954, %v1890, 0
        %v2004 = vsel %vm1954, %v1891, 0
        %v2007 = vsel %vm1954, %v1892, 0
        %v2010 = vsel %vm1954, %v1893, 0
        %v2013 = vsel %vm1954, %v1894, 0
        %v2016 = vsel %vm1954, %v1895, 0
        %v2019 = vsel %vm1954, %v1896, 0
        %v2022 = vsel %vm1954, %v1897, 0
        %v2025 = vsel %vm1954, %v1898, 0
        %v2028 = vsel %vm1954, %v1899, 0
        %v2031 = vsel %vm1954, %v1900, 0
        %v2034 = vsel %vm1954, %v1901, 0
        %v2037 = vsel %vm1954, %v1902, 0
        %v2040 = vsel %vm1954, %v1903, 0
        %v2043 = vsel %vm1954, %v1904, 0
        %v2046 = vsel %vm1954, %v1905, 0
        %v2049 = vsel %vm1954, %v1906, 0
        %v2052 = vsel %vm1954, %v1907, 0
        %v2055 = vsel %vm1954, %v1908, 0
        %v2058 = vsel %vm1954, %v1909, 0
        %v2061 = vsel %vm1954, %v1910, 0
        %v2064 = vsel %vm1954, %v1911, 0
        %v2067 = vsel %vm1954, %v1912, 0
        %v2070 = vsel %vm1954, %v1913, 0
        %v2073 = vsel %vm1954, %v1914, 0
        %v2076 = vsel %vm1954, %v1915, 0
        %v2079 = vsel %vm1954, %v1916, 0
        %v2082 = vsel %vm1954, %v1917, 0
        %v2085 = vsel %vm1954, %v1918, 0
        %v2088 = vsel %vm1954, %v1919, 0
        %v2091 = vsel %vm1954, %v1920, 0
        %v2094 = vsel %vm1954, %v1921, 0
        %v2097 = vsel %vm1954, %v1922, 0
        %v2100 = vsel %vm1954, %v1923, 0
        %v2103 = vsel %vm1954, %v1924, 0
        %v2106 = vsel %vm1954, %v1925, 0
        %v2109 = vsel %vm1954, %v1926, 0
        %v2112 = vsel %vm1954, %v1927, 0
        %v2115 = vsel %vm1954, %v1928, 0
        %v2118 = vsel %vm1954, %v1929, 0
        %v2121 = vsel %vm1954, %v1930, 0
        %v2124 = vsel %vm1954, %v1931, 0
        %v2127 = vsel %vm1954, %v1932, 0
        %v2130 = vsel %vm1954, %v1933, 0
        %v2133 = vsel %vm1954, %v1934, 0
        %v2136 = vsel %vm1954, %v1935, 0
        %v2139 = vsel %vm1954, %v1936, 0
        %v2142 = vsel %vm1954, %v1937, 0
        %v2145 = vsel %vm1954, %v1938, 0
        %2147 = vmatprep.subr.mxu0 0.0
        %2148 = vmatpush1.msra.mxu0 %v1939
        %2149 = vmatprep.subr.mxu0 0.0
        %2150 = vmatpush1.msra.mxu0 %v1940
        %2151 = vmatprep.subr.mxu0 0.0
        %2152 = vmatpush1.msra.mxu0 %v1941
        %2153 = vmatprep.subr.mxu0 0.0
        %2154 = vmatpush1.msra.mxu0 %v1942
        %2155 = vmatprep.subr.mxu0 0.0
        %2156 = vmatpush1.msra.mxu0 %v1943
        %2157 = vmatprep.subr.mxu0 0.0
        %2158 = vmatpush1.msra.mxu0 %v1944
        %2159 = vmatprep.subr.mxu0 0.0
        %2160 = vmatpush1.msra.mxu0 %v1945
        %2161 = vmatprep.subr.mxu0 0.0
        %2162 = vmatpush1.msra.mxu0 %v1946
        %2163 = vmatprep.subr.mxu0 0.0
        %2164 = vmatpush1.msra.mxu0 0.0
        %2165 = vmatprep.subr.mxu0 0.0
        %2166 = vmatpush1.msra.mxu0 0.0
        %2167 = vmatprep.subr.mxu0 0.0
        %2168 = vmatpush1.msra.mxu0 0.0
        %2169 = vmatprep.subr.mxu0 0.0
        %2170 = vmatpush1.msra.mxu0 0.0
        %2171 = vmatprep.subr.mxu0 0.0
        %2172 = vmatpush1.msra.mxu0 0.0
        %2173 = vmatprep.subr.mxu0 0.0
        %2174 = vmatpush1.msra.mxu0 0.0
        %2175 = vmatprep.subr.mxu0 0.0
        %2176 = vmatpush1.msra.mxu0 0.0
        %2177 = vmatprep.subr.mxu0 0.0
        %2178 = vmatpush1.msra.mxu0 0.0
        %2179 = vmatprep.subr.mxu0 0.0
        %2180 = vmatpush1.msra.mxu0 0.0
        %2181 = vmatprep.subr.mxu0 0.0
        %2182 = vmatpush1.msra.mxu0 0.0
        %2183 = vmatprep.subr.mxu0 0.0
        %2184 = vmatpush1.msra.mxu0 0.0
        %2185 = vmatprep.subr.mxu0 0.0
        %2186 = vmatpush1.msra.mxu0 0.0
        %2187 = vmatprep.subr.mxu0 0.0
        %2188 = vmatpush1.msra.mxu0 0.0
        %2189 = vmatprep.subr.mxu0 0.0
        %2190 = vmatpush1.msra.mxu0 0.0
        %2191 = vmatprep.subr.mxu0 0.0
        %2192 = vmatpush1.msra.mxu0 0.0
        %2193 = vmatprep.subr.mxu0 0.0
        %2194 = vmatpush1.msra.mxu0 0.0
        %2195 = vmatprep.subr.mxu0 0.0
        %2196 = vmatpush1.msra.mxu0 0.0
        %2197 = vmatprep.subr.mxu0 0.0
        %2198 = vmatpush1.msra.mxu0 0.0
        %2199 = vmatprep.subr.mxu0 0.0
        %2200 = vmatpush1.msra.mxu0 0.0
        %2201 = vmatprep.subr.mxu0 0.0
        %2202 = vmatpush1.msra.mxu0 0.0
        %2203 = vmatprep.subr.mxu0 0.0
        %2204 = vmatpush1.msra.mxu0 0.0
        %2205 = vmatprep.subr.mxu0 0.0
        %2206 = vmatpush1.msra.mxu0 0.0
        %2207 = vmatprep.subr.mxu0 0.0
        %2208 = vmatpush1.msra.mxu0 0.0
        %2209 = vmatprep.subr.mxu0 0.0
        %2210 = vmatpush1.msra.mxu0 0.0
        %2211 = vmatprep.mubr.f32.mxu0 0.0
        %2212 = vmatmul.mubr.f32.gmra.mrb[0].mxu0 %v1956
        %v2213 = vpop.f32.mrb[0].mxu0
        %v2214 = vadd.f32 %v1952, %v2213
        %v2215 = vpop.f32.mrb[0].mxu0
        %2216 = vmatprep.mubr.f32.mxu0 0.0
        %2217 = vmatmul.mubr.f32.gmra.mrb[0].mxu0 %v1959
        %v2218 = vpop.f32.mrb[0].mxu0
        %v2219 = vadd.f32 %v1952, %v2218
        %v2220 = vpop.f32.mrb[0].mxu0
        %2221 = vmatprep.mubr.f32.mxu0 0.0
        %2222 = vmatmul.mubr.f32.gmra.mrb[0].mxu0 %v1962
        %v2223 = vpop.f32.mrb[0].mxu0
        %v2224 = vadd.f32 %v1952, %v2223
        %v2225 = vpop.f32.mrb[0].mxu0
        %2226 = vmatprep.mubr.f32.mxu0 0.0
        %2227 = vmatmul.mubr.f32.gmra.mrb[0].mxu0 %v1965
        %v2228 = vpop.f32.mrb[0].mxu0
        %v2229 = vadd.f32 %v1952, %v2228
        %v2230 = vpop.f32.mrb[0].mxu0
        %2231 = vmatprep.mubr.f32.mxu0 0.0
        %2232 = vmatmul.mubr.f32.gmra.mrb[0].mxu0 %v1968
        %v2233 = vpop.f32.mrb[0].mxu0
        %v2234 = vadd.f32 %v1952, %v2233
        %v2235 = vpop.f32.mrb[0].mxu0
        %2236 = vmatprep.mubr.f32.mxu0 0.0
        %2237 = vmatmul.mubr.f32.gmra.mrb[0].mxu0 %v1971
        %v2238 = vpop.f32.mrb[0].mxu0
        %v2239 = vadd.f32 %v1952, %v2238
        %v2240 = vpop.f32.mrb[0].mxu0
        %2241 = vmatprep.mubr.f32.mxu0 0.0
        %2242 = vmatmul.mubr.f32.gmra.mrb[0].mxu0 %v1974
        %v2243 = vpop.f32.mrb[0].mxu0
        %v2244 = vadd.f32 %v1952, %v2243
        %v2245 = vpop.f32.mrb[0].mxu0
        %2246 = vmatprep.mubr.f32.mxu0 0.0
        %2247 = vmatmul.mubr.f32.gmra.mrb[0].mxu0 %v1977
        %v2248 = vpop.f32.mrb[0].mxu0
        %v2249 = vadd.f32 %v1952, %v2248
        %v2250 = vpop.f32.mrb[0].mxu0
        %2251 = vmatprep.mubr.f32.mxu0 0.0
        %2252 = vmatmul.mubr.f32.gmra.mrb[0].mxu0 %v1980
        %v2253 = vpop.f32.mrb[0].mxu0
        %v2254 = vadd.f32 %v1952, %v2253
        %v2255 = vpop.f32.mrb[0].mxu0
        %2256 = vmatprep.mubr.f32.mxu0 0.0
        %2257 = vmatmul.mubr.f32.gmra.mrb[0].mxu0 %v1983
        %v2258 = vpop.f32.mrb[0].mxu0
        %v2259 = vadd.f32 %v1952, %v2258
        %v2260 = vpop.f32.mrb[0].mxu0
        %2261 = vmatprep.mubr.f32.mxu0 0.0
        %2262 = vmatmul.mubr.f32.gmra.mrb[0].mxu0 %v1986
        %v2263 = vpop.f32.mrb[0].mxu0
        %v2264 = vadd.f32 %v1952, %v2263
        %v2265 = vpop.f32.mrb[0].mxu0
        %2266 = vmatprep.mubr.f32.mxu0 0.0
        %2267 = vmatmul.mubr.f32.gmra.mrb[0].mxu0 %v1989
        %v2268 = vpop.f32.mrb[0].mxu0
        %v2269 = vadd.f32 %v1952, %v2268
        %v2270 = vpop.f32.mrb[0].mxu0
        %2271 = vmatprep.mubr.f32.mxu0 0.0
        %2272 = vmatmul.mubr.f32.gmra.mrb[0].mxu0 %v1992
        %v2273 = vpop.f32.mrb[0].mxu0
        %v2274 = vadd.f32 %v1952, %v2273
        %v2275 = vpop.f32.mrb[0].mxu0
        %2276 = vmatprep.mubr.f32.mxu0 0.0
        %2277 = vmatmul.mubr.f32.gmra.mrb[0].mxu0 %v1995
        %v2278 = vpop.f32.mrb[0].mxu0
        %v2279 = vadd.f32 %v1952, %v2278
        %v2280 = vpop.f32.mrb[0].mxu0
        %2281 = vmatprep.mubr.f32.mxu0 0.0
        %2282 = vmatmul.mubr.f32.gmra.mrb[0].mxu0 %v1998
        %v2283 = vpop.f32.mrb[0].mxu0
        %v2284 = vadd.f32 %v1952, %v2283
        %v2285 = vpop.f32.mrb[0].mxu0
        %2286 = vmatprep.mubr.f32.mxu0 0.0
        %2287 = vmatmul.mubr.f32.gmra.mrb[0].mxu0 %v2001
        %v2288 = vpop.f32.mrb[0].mxu0
        %v2289 = vadd.f32 %v1952, %v2288
        %v2290 = vpop.f32.mrb[0].mxu0
        %2291 = vmatprep.mubr.f32.mxu0 0.0
        %2292 = vmatmul.mubr.f32.gmra.mrb[0].mxu0 %v2004
        %v2293 = vpop.f32.mrb[0].mxu0
        %v2294 = vadd.f32 %v1952, %v2293
        %v2295 = vpop.f32.mrb[0].mxu0
        %2296 = vmatprep.mubr.f32.mxu0 0.0
        %2297 = vmatmul.mubr.f32.gmra.mrb[0].mxu0 %v2007
        %v2298 = vpop.f32.mrb[0].mxu0
        %v2299 = vadd.f32 %v1952, %v2298
        %v2300 = vpop.f32.mrb[0].mxu0
        %2301 = vmatprep.mubr.f32.mxu0 0.0
        %2302 = vmatmul.mubr.f32.gmra.mrb[0].mxu0 %v2010
        %v2303 = vpop.f32.mrb[0].mxu0
        %v2304 = vadd.f32 %v1952, %v2303
        %v2305 = vpop.f32.mrb[0].mxu0
        %2306 = vmatprep.mubr.f32.mxu0 0.0
        %2307 = vmatmul.mubr.f32.gmra.mrb[0].mxu0 %v2013
        %v2308 = vpop.f32.mrb[0].mxu0
        %v2309 = vadd.f32 %v1952, %v2308
        %v2310 = vpop.f32.mrb[0].mxu0
        %2311 = vmatprep.mubr.f32.mxu0 0.0
        %2312 = vmatmul.mubr.f32.gmra.mrb[0].mxu0 %v2016
        %v2313 = vpop.f32.mrb[0].mxu0
        %v2314 = vadd.f32 %v1952, %v2313
        %v2315 = vpop.f32.mrb[0].mxu0
        %2316 = vmatprep.mubr.f32.mxu0 0.0
        %2317 = vmatmul.mubr.f32.gmra.mrb[0].mxu0 %v2019
        %v2318 = vpop.f32.mrb[0].mxu0
        %v2319 = vadd.f32 %v1952, %v2318
        %v2320 = vpop.f32.mrb[0].mxu0
        %2321 = vmatprep.mubr.f32.mxu0 0.0
        %2322 = vmatmul.mubr.f32.gmra.mrb[0].mxu0 %v2022
        %v2323 = vpop.f32.mrb[0].mxu0
        %v2324 = vadd.f32 %v1952, %v2323
        %v2325 = vpop.f32.mrb[0].mxu0
        %2326 = vmatprep.mubr.f32.mxu0 0.0
        %2327 = vmatmul.mubr.f32.gmra.mrb[0].mxu0 %v2025
        %v2328 = vpop.f32.mrb[0].mxu0
        %v2329 = vadd.f32 %v1952, %v2328
        %v2330 = vpop.f32.mrb[0].mxu0
        %2331 = vmatprep.mubr.f32.mxu0 0.0
        %2332 = vmatmul.mubr.f32.gmra.mrb[0].mxu0 %v2028
        %v2333 = vpop.f32.mrb[0].mxu0
        %v2334 = vadd.f32 %v1952, %v2333
        %v2335 = vpop.f32.mrb[0].mxu0
        %2336 = vmatprep.mubr.f32.mxu0 0.0
        %2337 = vmatmul.mubr.f32.gmra.mrb[0].mxu0 %v2031
        %v2338 = vpop.f32.mrb[0].mxu0
        %v2339 = vadd.f32 %v1952, %v2338
        %v2340 = vpop.f32.mrb[0].mxu0
        %2341 = vmatprep.mubr.f32.mxu0 0.0
        %2342 = vmatmul.mubr.f32.gmra.mrb[0].mxu0 %v2034
        %v2343 = vpop.f32.mrb[0].mxu0
        %v2344 = vadd.f32 %v1952, %v2343
        %v2345 = vpop.f32.mrb[0].mxu0
        %2346 = vmatprep.mubr.f32.mxu0 0.0
        %2347 = vmatmul.mubr.f32.gmra.mrb[0].mxu0 %v2037
        %v2348 = vpop.f32.mrb[0].mxu0
        %v2349 = vadd.f32 %v1952, %v2348
        %v2350 = vpop.f32.mrb[0].mxu0
        %2351 = vmatprep.mubr.f32.mxu0 0.0
        %2352 = vmatmul.mubr.f32.gmra.mrb[0].mxu0 %v2040
        %v2353 = vpop.f32.mrb[0].mxu0
        %v2354 = vadd.f32 %v1952, %v2353
        %v2355 = vpop.f32.mrb[0].mxu0
        %2356 = vmatprep.mubr.f32.mxu0 0.0
        %2357 = vmatmul.mubr.f32.gmra.mrb[0].mxu0 %v2043
        %v2358 = vpop.f32.mrb[0].mxu0
        %v2359 = vadd.f32 %v1952, %v2358
        %v2360 = vpop.f32.mrb[0].mxu0
        %2361 = vmatprep.mubr.f32.mxu0 0.0
        %2362 = vmatmul.mubr.f32.gmra.mrb[0].mxu0 %v2046
        %v2363 = vpop.f32.mrb[0].mxu0
        %v2364 = vadd.f32 %v1952, %v2363
        %v2365 = vpop.f32.mrb[0].mxu0
        %2366 = vmatprep.mubr.f32.mxu0 0.0
        %2367 = vmatmul.mubr.f32.gmra.mrb[0].mxu0 %v2049
        %v2368 = vpop.f32.mrb[0].mxu0
        %v2369 = vadd.f32 %v1952, %v2368
        %v2370 = vpop.f32.mrb[0].mxu0
        %2371 = vmatprep.mubr.f32.mxu0 0.0
        %2372 = vmatmul.mubr.f32.gmra.mrb[0].mxu0 %v2052
        %v2373 = vpop.f32.mrb[0].mxu0
        %v2374 = vadd.f32 %v1952, %v2373
        %v2375 = vpop.f32.mrb[0].mxu0
        %2376 = vmatprep.mubr.f32.mxu0 0.0
        %2377 = vmatmul.mubr.f32.gmra.mrb[0].mxu0 %v2055
        %v2378 = vpop.f32.mrb[0].mxu0
        %v2379 = vadd.f32 %v1952, %v2378
        %v2380 = vpop.f32.mrb[0].mxu0
        %2381 = vmatprep.mubr.f32.mxu0 0.0
        %2382 = vmatmul.mubr.f32.gmra.mrb[0].mxu0 %v2058
        %v2383 = vpop.f32.mrb[0].mxu0
        %v2384 = vadd.f32 %v1952, %v2383
        %v2385 = vpop.f32.mrb[0].mxu0
        %2386 = vmatprep.mubr.f32.mxu0 0.0
        %2387 = vmatmul.mubr.f32.gmra.mrb[0].mxu0 %v2061
        %v2388 = vpop.f32.mrb[0].mxu0
        %v2389 = vadd.f32 %v1952, %v2388
        %v2390 = vpop.f32.mrb[0].mxu0
        %2391 = vmatprep.mubr.f32.mxu0 0.0
        %2392 = vmatmul.mubr.f32.gmra.mrb[0].mxu0 %v2064
        %v2393 = vpop.f32.mrb[0].mxu0
        %v2394 = vadd.f32 %v1952, %v2393
        %v2395 = vpop.f32.mrb[0].mxu0
        %2396 = vmatprep.mubr.f32.mxu0 0.0
        %2397 = vmatmul.mubr.f32.gmra.mrb[0].mxu0 %v2067
        %v2398 = vpop.f32.mrb[0].mxu0
        %v2399 = vadd.f32 %v1952, %v2398
        %v2400 = vpop.f32.mrb[0].mxu0
        %2401 = vmatprep.mubr.f32.mxu0 0.0
        %2402 = vmatmul.mubr.f32.gmra.mrb[0].mxu0 %v2070
        %v2403 = vpop.f32.mrb[0].mxu0
        %v2404 = vadd.f32 %v1952, %v2403
        %v2405 = vpop.f32.mrb[0].mxu0
        %2406 = vmatprep.mubr.f32.mxu0 0.0
        %2407 = vmatmul.mubr.f32.gmra.mrb[0].mxu0 %v2073
        %v2408 = vpop.f32.mrb[0].mxu0
        %v2409 = vadd.f32 %v1952, %v2408
        %v2410 = vpop.f32.mrb[0].mxu0
        %2411 = vmatprep.mubr.f32.mxu0 0.0
        %2412 = vmatmul.mubr.f32.gmra.mrb[0].mxu0 %v2076
        %v2413 = vpop.f32.mrb[0].mxu0
        %v2414 = vadd.f32 %v1952, %v2413
        %v2415 = vpop.f32.mrb[0].mxu0
        %2416 = vmatprep.mubr.f32.mxu0 0.0
        %2417 = vmatmul.mubr.f32.gmra.mrb[0].mxu0 %v2079
        %v2418 = vpop.f32.mrb[0].mxu0
        %v2419 = vadd.f32 %v1952, %v2418
        %v2420 = vpop.f32.mrb[0].mxu0
        %2421 = vmatprep.mubr.f32.mxu0 0.0
        %2422 = vmatmul.mubr.f32.gmra.mrb[0].mxu0 %v2082
        %v2423 = vpop.f32.mrb[0].mxu0
        %v2424 = vadd.f32 %v1952, %v2423
        %v2425 = vpop.f32.mrb[0].mxu0
        %2426 = vmatprep.mubr.f32.mxu0 0.0
        %2427 = vmatmul.mubr.f32.gmra.mrb[0].mxu0 %v2085
        %v2428 = vpop.f32.mrb[0].mxu0
        %v2429 = vadd.f32 %v1952, %v2428
        %v2430 = vpop.f32.mrb[0].mxu0
        %2431 = vmatprep.mubr.f32.mxu0 0.0
        %2432 = vmatmul.mubr.f32.gmra.mrb[0].mxu0 %v2088
        %v2433 = vpop.f32.mrb[0].mxu0
        %v2434 = vadd.f32 %v1952, %v2433
        %v2435 = vpop.f32.mrb[0].mxu0
        %2436 = vmatprep.mubr.f32.mxu0 0.0
        %2437 = vmatmul.mubr.f32.gmra.mrb[0].mxu0 %v2091
        %v2438 = vpop.f32.mrb[0].mxu0
        %v2439 = vadd.f32 %v1952, %v2438
        %v2440 = vpop.f32.mrb[0].mxu0
        %2441 = vmatprep.mubr.f32.mxu0 0.0
        %2442 = vmatmul.mubr.f32.gmra.mrb[0].mxu0 %v2094
        %v2443 = vpop.f32.mrb[0].mxu0
        %v2444 = vadd.f32 %v1952, %v2443
        %v2445 = vpop.f32.mrb[0].mxu0
        %2446 = vmatprep.mubr.f32.mxu0 0.0
        %2447 = vmatmul.mubr.f32.gmra.mrb[0].mxu0 %v2097
        %v2448 = vpop.f32.mrb[0].mxu0
        %v2449 = vadd.f32 %v1952, %v2448
        %v2450 = vpop.f32.mrb[0].mxu0
        %2451 = vmatprep.mubr.f32.mxu0 0.0
        %2452 = vmatmul.mubr.f32.gmra.mrb[0].mxu0 %v2100
        %v2453 = vpop.f32.mrb[0].mxu0
        %v2454 = vadd.f32 %v1952, %v2453
        %v2455 = vpop.f32.mrb[0].mxu0
        %2456 = vmatprep.mubr.f32.mxu0 0.0
        %2457 = vmatmul.mubr.f32.gmra.mrb[0].mxu0 %v2103
        %v2458 = vpop.f32.mrb[0].mxu0
        %v2459 = vadd.f32 %v1952, %v2458
        %v2460 = vpop.f32.mrb[0].mxu0
        %2461 = vmatprep.mubr.f32.mxu0 0.0
        %2462 = vmatmul.mubr.f32.gmra.mrb[0].mxu0 %v2106
        %v2463 = vpop.f32.mrb[0].mxu0
        %v2464 = vadd.f32 %v1952, %v2463
        %v2465 = vpop.f32.mrb[0].mxu0
        %2466 = vmatprep.mubr.f32.mxu0 0.0
        %2467 = vmatmul.mubr.f32.gmra.mrb[0].mxu0 %v2109
        %v2468 = vpop.f32.mrb[0].mxu0
        %v2469 = vadd.f32 %v1952, %v2468
        %v2470 = vpop.f32.mrb[0].mxu0
        %2471 = vmatprep.mubr.f32.mxu0 0.0
        %2472 = vmatmul.mubr.f32.gmra.mrb[0].mxu0 %v2112
        %v2473 = vpop.f32.mrb[0].mxu0
        %v2474 = vadd.f32 %v1952, %v2473
        %v2475 = vpop.f32.mrb[0].mxu0
        %2476 = vmatprep.mubr.f32.mxu0 0.0
        %2477 = vmatmul.mubr.f32.gmra.mrb[0].mxu0 %v2115
        %v2478 = vpop.f32.mrb[0].mxu0
        %v2479 = vadd.f32 %v1952, %v2478
        %v2480 = vpop.f32.mrb[0].mxu0
        %2481 = vmatprep.mubr.f32.mxu0 0.0
        %2482 = vmatmul.mubr.f32.gmra.mrb[0].mxu0 %v2118
        %v2483 = vpop.f32.mrb[0].mxu0
        %v2484 = vadd.f32 %v1952, %v2483
        %v2485 = vpop.f32.mrb[0].mxu0
        %2486 = vmatprep.mubr.f32.mxu0 0.0
        %2487 = vmatmul.mubr.f32.gmra.mrb[0].mxu0 %v2121
        %v2488 = vpop.f32.mrb[0].mxu0
        %v2489 = vadd.f32 %v1952, %v2488
        %v2490 = vpop.f32.mrb[0].mxu0
        %2491 = vmatprep.mubr.f32.mxu0 0.0
        %2492 = vmatmul.mubr.f32.gmra.mrb[0].mxu0 %v2124
        %v2493 = vpop.f32.mrb[0].mxu0
        %v2494 = vadd.f32 %v1952, %v2493
        %v2495 = vpop.f32.mrb[0].mxu0
        %2496 = vmatprep.mubr.f32.mxu0 0.0
        %2497 = vmatmul.mubr.f32.gmra.mrb[0].mxu0 %v2127
        %v2498 = vpop.f32.mrb[0].mxu0
        %v2499 = vadd.f32 %v1952, %v2498
        %v2500 = vpop.f32.mrb[0].mxu0
        %2501 = vmatprep.mubr.f32.mxu0 0.0
        %2502 = vmatmul.mubr.f32.gmra.mrb[0].mxu0 %v2130
        %v2503 = vpop.f32.mrb[0].mxu0
        %v2504 = vadd.f32 %v1952, %v2503
        %v2505 = vpop.f32.mrb[0].mxu0
        %2506 = vmatprep.mubr.f32.mxu0 0.0
        %2507 = vmatmul.mubr.f32.gmra.mrb[0].mxu0 %v2133
        %v2508 = vpop.f32.mrb[0].mxu0
        %v2509 = vadd.f32 %v1952, %v2508
        %v2510 = vpop.f32.mrb[0].mxu0
        %2511 = vmatprep.mubr.f32.mxu0 0.0
        %2512 = vmatmul.mubr.f32.gmra.mrb[0].mxu0 %v2136
        %v2513 = vpop.f32.mrb[0].mxu0
        %v2514 = vadd.f32 %v1952, %v2513
        %v2515 = vpop.f32.mrb[0].mxu0
        %2516 = vmatprep.mubr.f32.mxu0 0.0
        %2517 = vmatmul.mubr.f32.gmra.mrb[0].mxu0 %v2139
        %v2518 = vpop.f32.mrb[0].mxu0
        %v2519 = vadd.f32 %v1952, %v2518
        %v2520 = vpop.f32.mrb[0].mxu0
        %2521 = vmatprep.mubr.f32.mxu0 0.0
        %2522 = vmatmul.mubr.f32.gmra.mrb[0].mxu0 %v2142
        %v2523 = vpop.f32.mrb[0].mxu0
        %v2524 = vadd.f32 %v1952, %v2523
        %v2525 = vpop.f32.mrb[0].mxu0
        %2526 = vmatprep.mubr.f32.mxu0 0.0
        %2527 = vmatmul.mubr.f32.gmra.mrb[0].mxu0 %v2145
        %v2528 = vpop.f32.mrb[0].mxu0
        %v2529 = vadd.f32 %v1952, %v2528
        %v2530 = vpop.f32.mrb[0].mxu0
        %2531 = vdwg.mxu0
        %v2532 = vmax.f32 %v2214, 0.0
        %v2533 = vmax.f32 %v2219, 0.0
        %v2534 = vmax.f32 %v2224, 0.0
        %v2535 = vmax.f32 %v2229, 0.0
        %v2536 = vmax.f32 %v2234, 0.0
        %v2537 = vmax.f32 %v2239, 0.0
        %v2538 = vmax.f32 %v2244, 0.0
        %v2539 = vmax.f32 %v2249, 0.0
        %v2540 = vmax.f32 %v2254, 0.0
        %v2541 = vmax.f32 %v2259, 0.0
        %v2542 = vmax.f32 %v2264, 0.0
        %v2543 = vmax.f32 %v2269, 0.0
        %v2544 = vmax.f32 %v2274, 0.0
        %v2545 = vmax.f32 %v2279, 0.0
        %v2546 = vmax.f32 %v2284, 0.0
        %v2547 = vmax.f32 %v2289, 0.0
        %v2548 = vmax.f32 %v2294, 0.0
        %v2549 = vmax.f32 %v2299, 0.0
        %v2550 = vmax.f32 %v2304, 0.0
        %v2551 = vmax.f32 %v2309, 0.0
        %v2552 = vmax.f32 %v2314, 0.0
        %v2553 = vmax.f32 %v2319, 0.0
        %v2554 = vmax.f32 %v2324, 0.0
        %v2555 = vmax.f32 %v2329, 0.0
        %v2556 = vmax.f32 %v2334, 0.0
        %v2557 = vmax.f32 %v2339, 0.0
        %v2558 = vmax.f32 %v2344, 0.0
        %v2559 = vmax.f32 %v2349, 0.0
        %v2560 = vmax.f32 %v2354, 0.0
        %v2561 = vmax.f32 %v2359, 0.0
        %v2562 = vmax.f32 %v2364, 0.0
        %v2563 = vmax.f32 %v2369, 0.0
        %v2564 = vmax.f32 %v2374, 0.0
        %v2565 = vmax.f32 %v2379, 0.0
        %v2566 = vmax.f32 %v2384, 0.0
        %v2567 = vmax.f32 %v2389, 0.0
        %v2568 = vmax.f32 %v2394, 0.0
        %v2569 = vmax.f32 %v2399, 0.0
        %v2570 = vmax.f32 %v2404, 0.0
        %v2571 = vmax.f32 %v2409, 0.0
        %v2572 = vmax.f32 %v2414, 0.0
        %v2573 = vmax.f32 %v2419, 0.0
        %v2574 = vmax.f32 %v2424, 0.0
        %v2575 = vmax.f32 %v2429, 0.0
        %v2576 = vmax.f32 %v2434, 0.0
        %v2577 = vmax.f32 %v2439, 0.0
        %v2578 = vmax.f32 %v2444, 0.0
        %v2579 = vmax.f32 %v2449, 0.0
        %v2580 = vmax.f32 %v2454, 0.0
        %v2581 = vmax.f32 %v2459, 0.0
        %v2582 = vmax.f32 %v2464, 0.0
        %v2583 = vmax.f32 %v2469, 0.0
        %v2584 = vmax.f32 %v2474, 0.0
        %v2585 = vmax.f32 %v2479, 0.0
        %v2586 = vmax.f32 %v2484, 0.0
        %v2587 = vmax.f32 %v2489, 0.0
        %v2588 = vmax.f32 %v2494, 0.0
        %v2589 = vmax.f32 %v2499, 0.0
        %v2590 = vmax.f32 %v2504, 0.0
        %v2591 = vmax.f32 %v2509, 0.0
        %v2592 = vmax.f32 %v2514, 0.0
        %v2593 = vmax.f32 %v2519, 0.0
        %v2594 = vmax.f32 %v2524, 0.0
        %v2595 = vmax.f32 %v2529, 0.0
        %v2596 = vadd.f32 %v966, %v2532
        %v2597 = vadd.f32 %v971, %v2533
        %v2598 = vadd.f32 %v976, %v2534
        %v2599 = vadd.f32 %v981, %v2535
        %v2600 = vadd.f32 %v986, %v2536
        %v2601 = vadd.f32 %v991, %v2537
        %v2602 = vadd.f32 %v996, %v2538
        %v2603 = vadd.f32 %v1001, %v2539
        %v2604 = vadd.f32 %v1006, %v2540
        %v2605 = vadd.f32 %v1011, %v2541
        %v2606 = vadd.f32 %v1016, %v2542
        %v2607 = vadd.f32 %v1021, %v2543
        %v2608 = vadd.f32 %v1026, %v2544
        %v2609 = vadd.f32 %v1031, %v2545
        %v2610 = vadd.f32 %v1036, %v2546
        %v2611 = vadd.f32 %v1041, %v2547
        %v2612 = vadd.f32 %v1046, %v2548
        %v2613 = vadd.f32 %v1051, %v2549
        %v2614 = vadd.f32 %v1056, %v2550
        %v2615 = vadd.f32 %v1061, %v2551
        %v2616 = vadd.f32 %v1066, %v2552
        %v2617 = vadd.f32 %v1071, %v2553
        %v2618 = vadd.f32 %v1076, %v2554
        %v2619 = vadd.f32 %v1081, %v2555
        %v2620 = vadd.f32 %v1086, %v2556
        %v2621 = vadd.f32 %v1091, %v2557
        %v2622 = vadd.f32 %v1096, %v2558
        %v2623 = vadd.f32 %v1101, %v2559
        %v2624 = vadd.f32 %v1106, %v2560
        %v2625 = vadd.f32 %v1111, %v2561
        %v2626 = vadd.f32 %v1116, %v2562
        %v2627 = vadd.f32 %v1121, %v2563
        %v2628 = vadd.f32 %v1126, %v2564
        %v2629 = vadd.f32 %v1131, %v2565
        %v2630 = vadd.f32 %v1136, %v2566
        %v2631 = vadd.f32 %v1141, %v2567
        %v2632 = vadd.f32 %v1146, %v2568
        %v2633 = vadd.f32 %v1151, %v2569
        %v2634 = vadd.f32 %v1156, %v2570
        %v2635 = vadd.f32 %v1161, %v2571
        %v2636 = vadd.f32 %v1166, %v2572
        %v2637 = vadd.f32 %v1171, %v2573
        %v2638 = vadd.f32 %v1176, %v2574
        %v2639 = vadd.f32 %v1181, %v2575
        %v2640 = vadd.f32 %v1186, %v2576
        %v2641 = vadd.f32 %v1191, %v2577
        %v2642 = vadd.f32 %v1196, %v2578
        %v2643 = vadd.f32 %v1201, %v2579
        %v2644 = vadd.f32 %v1206, %v2580
        %v2645 = vadd.f32 %v1211, %v2581
        %v2646 = vadd.f32 %v1216, %v2582
        %v2647 = vadd.f32 %v1221, %v2583
        %v2648 = vadd.f32 %v1226, %v2584
        %v2649 = vadd.f32 %v1231, %v2585
        %v2650 = vadd.f32 %v1236, %v2586
        %v2651 = vadd.f32 %v1241, %v2587
        %v2652 = vadd.f32 %v1246, %v2588
        %v2653 = vadd.f32 %v1251, %v2589
        %v2654 = vadd.f32 %v1256, %v2590
        %v2655 = vadd.f32 %v1261, %v2591
        %v2656 = vadd.f32 %v1266, %v2592
        %v2657 = vadd.f32 %v1271, %v2593
        %v2658 = vadd.f32 %v1276, %v2594
        %v2659 = vadd.f32 %v1281, %v2595
        %2660 = vst [vmem:[%s393] sm:$0xff] %v2596
        %2661 = vst [vmem:[%s393 + $0x8] sm:$0xff] %v2597
        %2662 = vst [vmem:[%s393 + $0x10] sm:$0xff] %v2598
        %2663 = vst [vmem:[%s393 + $0x18] sm:$0xff] %v2599
        %2664 = vst [vmem:[%s393 + $0x20] sm:$0xff] %v2600
        %2665 = vst [vmem:[%s393 + $0x28] sm:$0xff] %v2601
        %2666 = vst [vmem:[%s393 + $0x30] sm:$0xff] %v2602
        %2667 = vst [vmem:[%s393 + $0x38] sm:$0xff] %v2603
        %2668 = vst [vmem:[%s393 + $0x40] sm:$0xff] %v2604
        %2669 = vst [vmem:[%s393 + $0x48] sm:$0xff] %v2605
        %2670 = vst [vmem:[%s393 + $0x50] sm:$0xff] %v2606
        %2671 = vst [vmem:[%s393 + $0x58] sm:$0xff] %v2607
        %2672 = vst [vmem:[%s393 + $0x60] sm:$0xff] %v2608
        %2673 = vst [vmem:[%s393 + $0x68] sm:$0xff] %v2609
        %2674 = vst [vmem:[%s393 + $0x70] sm:$0xff] %v2610
        %2675 = vst [vmem:[%s393 + $0x78] sm:$0xff] %v2611
        %2676 = vst [vmem:[%s393 + $0x80] sm:$0xff] %v2612
        %2677 = vst [vmem:[%s393 + $0x88] sm:$0xff] %v2613
        %2678 = vst [vmem:[%s393 + $0x90] sm:$0xff] %v2614
        %2679 = vst [vmem:[%s393 + $0x98] sm:$0xff] %v2615
        %2680 = vst [vmem:[%s393 + $0xa0] sm:$0xff] %v2616
        %2681 = vst [vmem:[%s393 + $0xa8] sm:$0xff] %v2617
        %2682 = vst [vmem:[%s393 + $0xb0] sm:$0xff] %v2618
        %2683 = vst [vmem:[%s393 + $0xb8] sm:$0xff] %v2619
        %2684 = vst [vmem:[%s393 + $0xc0] sm:$0xff] %v2620
        %2685 = vst [vmem:[%s393 + $0xc8] sm:$0xff] %v2621
        %2686 = vst [vmem:[%s393 + $0xd0] sm:$0xff] %v2622
        %2687 = vst [vmem:[%s393 + $0xd8] sm:$0xff] %v2623
        %2688 = vst [vmem:[%s393 + $0xe0] sm:$0xff] %v2624
        %2689 = vst [vmem:[%s393 + $0xe8] sm:$0xff] %v2625
        %2690 = vst [vmem:[%s393 + $0xf0] sm:$0xff] %v2626
        %2691 = vst [vmem:[%s393 + $0xf8] sm:$0xff] %v2627
        %2692 = vst [vmem:[%s393 + $0x100] sm:$0xff] %v2628
        %2693 = vst [vmem:[%s393 + $0x108] sm:$0xff] %v2629
        %2694 = vst [vmem:[%s393 + $0x110] sm:$0xff] %v2630
        %2695 = vst [vmem:[%s393 + $0x118] sm:$0xff] %v2631
        %2696 = vst [vmem:[%s393 + $0x120] sm:$0xff] %v2632
        %2697 = vst [vmem:[%s393 + $0x128] sm:$0xff] %v2633
        %2698 = vst [vmem:[%s393 + $0x130] sm:$0xff] %v2634
        %2699 = vst [vmem:[%s393 + $0x138] sm:$0xff] %v2635
        %2700 = vst [vmem:[%s393 + $0x140] sm:$0xff] %v2636
        %2701 = vst [vmem:[%s393 + $0x148] sm:$0xff] %v2637
        %2702 = vst [vmem:[%s393 + $0x150] sm:$0xff] %v2638
        %2703 = vst [vmem:[%s393 + $0x158] sm:$0xff] %v2639
        %2704 = vst [vmem:[%s393 + $0x160] sm:$0xff] %v2640
        %2705 = vst [vmem:[%s393 + $0x168] sm:$0xff] %v2641
        %2706 = vst [vmem:[%s393 + $0x170] sm:$0xff] %v2642
        %2707 = vst [vmem:[%s393 + $0x178] sm:$0xff] %v2643
        %2708 = vst [vmem:[%s393 + $0x180] sm:$0xff] %v2644
        %2709 = vst [vmem:[%s393 + $0x188] sm:$0xff] %v2645
        %2710 = vst [vmem:[%s393 + $0x190] sm:$0xff] %v2646
        %2711 = vst [vmem:[%s393 + $0x198] sm:$0xff] %v2647
        %2712 = vst [vmem:[%s393 + $0x1a0] sm:$0xff] %v2648
        %2713 = vst [vmem:[%s393 + $0x1a8] sm:$0xff] %v2649
        %2714 = vst [vmem:[%s393 + $0x1b0] sm:$0xff] %v2650
        %2715 = vst [vmem:[%s393 + $0x1b8] sm:$0xff] %v2651
        %2716 = vst [vmem:[%s393 + $0x1c0] sm:$0xff] %v2652
        %2717 = vst [vmem:[%s393 + $0x1c8] sm:$0xff] %v2653
        %2718 = vst [vmem:[%s393 + $0x1d0] sm:$0xff] %v2654
        %2719 = vst [vmem:[%s393 + $0x1d8] sm:$0xff] %v2655
        %2720 = vst [vmem:[%s393 + $0x1e0] sm:$0xff] %v2656
        %2721 = vst [vmem:[%s393 + $0x1e8] sm:$0xff] %v2657
        %2722 = vst [vmem:[%s393 + $0x1f0] sm:$0xff] %v2658
        %2723 = vst [vmem:[%s393 + $0x1f8] sm:$0xff] %v2659
        %s2724 = sand.u32 %s252, 1
        %s2725 = scalar_lea.sflag [#allocation3], %s2724
        %s2726 = sand.u32 %s252, 1
        %s2727 = smul.addr %s2726, 512
        %s2728 = scalar_lea.vmem [#allocation2], %s2727
        // Predicated region
        $region61: #{tpu_custom_call.1} parent=59 // pred_check
          %p2729 = pneg %p262
        $region62: #{tpu_custom_call.1} parent=59 // pred_check_branch
          %2731 = sbr.rel (%p2729) target = $region64
        $region63: #{tpu_custom_call.1} parent=59 // pred_region
          %s2732 = smul.u32 64, %s24
          %s2733 = ssub.s32 188, %s2732
          %p2734 = scmp.lt.s32.totalorder %s2733, 64
          %s2735 = scalar_select %p2734, %s2733, 64
          %s2736 = smul.u32 128, %s2735
          %s2738 = ssub.s32 8192, %s2736
          %2739 = vsyncadd %s2725, %s2738
          %p2740 = scmp.ne.s32.totalorder 0, %s2736
          %s2741 = smul.addr %s2732, 128
          %s2742 = scalar_lea.hbm %s10, %s2741
          %s2743 = smul.u32 8, %s2735
          %s2744 = sshll.u32 %s2728, 4
          %s2745 = int_to_ptr.vmem [resolvable:$true] %s2744
          %s2746 = sshll.u32 %s2743, 4
          %2750 = dma.vmem_to_hbm [thread:$0]  (%p2740), %s2745, %s2746, %s2742, %s2725, 128, 128, 8
        $region64: #{tpu_custom_call.1} parent=59 // pred_fallthru
          _
      $region60: #{tpu_custom_call.1} parent=5 // pred_fallthru
        _
      %p2751 = scmp.le.s32.totalorder 2, %s19
      // Predicated region
      $region65: #{tpu_custom_call.1} parent=5 // pred_check
        %p2752 = pneg %p2751
      $region66: #{tpu_custom_call.1} parent=5 // pred_check_branch
        %2754 = sbr.rel (%p2752) target = $region68
      $region67: #{tpu_custom_call.1} parent=5 // pred_region
        %s2755 = ssub.s32 %s19, 2
        // Predicated region
        $region69: #{tpu_custom_call.1} parent=67 // pred_check
          %p2756 = pneg %p268
        $region70: #{tpu_custom_call.1} parent=67 // pred_check_branch
          %2758 = sbr.rel (%p2756) target = $region72
        $region71: #{tpu_custom_call.1} parent=67 // pred_region
          %s2759 = sand.u32 %s253, 1
          %s2760 = scalar_lea.sflag [#allocation3], %s2759
          %s2761 = sand.u32 %s253, 1
          %s2762 = smul.addr %s2761, 512
          %s2763 = scalar_lea.vmem [#allocation2], %s2762
          %2764 = dma.done %s2760, 8192
        $region72: #{tpu_custom_call.1} parent=67 // pred_fallthru
          _
      $region68: #{tpu_custom_call.1} parent=5 // pred_fallthru
        _
    $region6: #{tpu_custom_call.1} parent=1 // loop_footer
      %s23 = sadd.s32 1, %s19
    $region7: #{tpu_custom_call.1} parent=1 // loop_footer_branch
      %18 = sbr.rel target = $region3
    $region8: #{tpu_custom_call.1} parent=1 // loop_exit
      _
    %2765 = vsyncpa [#allocation3], 1
    %s2766 = scalar_lea.sflag [#allocation3], 1
    %2767 = vsyncpa %s2766, 1

</llo_original>
